<compile_context>
chip_gen: v7x
topology: tpu7x:2x2x1
jax: 0.10.0
libtpu: 0.0.40
codegen_flags: <defaults>
</compile_context>

<pallas_src>
import math
from typing import NamedTuple, Tuple

import jax
import jax.numpy as jnp
from jax.experimental import pallas as pl
from jax.experimental.pallas import tpu as pltpu

LANE = 128                     # hidden feature dims are padded to this
ROW_ALIGN = 16                 # batch-tile row alignment (safe for f32 & bf16)
SMALL_BATCH_THRESHOLD = 512    # below this, a plain XLA dot chain wins
N_LAYERS = 5                   # fc1..fc4 + out


def _round_up(n, m):
    return ((n + m - 1) // m) * m


# ---------------------------------------------------------------------------
# One-time parameter packing (hoisted out of the per-forward-call path)
# ---------------------------------------------------------------------------
class PackedParams(NamedTuple):
    arrays: Tuple[jnp.ndarray, ...]   # (w1, b1, ..., w5, b5), padded / cast
    dims: Tuple[int, ...]             # (G_in, w1, w2, w3, w4, G_out)
    pdims: Tuple[int, ...]            # padded dims; network edges stay unpadded
    compute_dtype: jnp.dtype


def pack_params(params, compute_dtype=jnp.bfloat16):
    """Pad hidden dims to 128 lanes and cast weights to the MXU operand dtype.
    Call once at setup; re-packing per forward call wastes HBM bandwidth."""
    assert len(params) == N_LAYERS
    dims = tuple([params[0][0].shape[0]] + [w.shape[1] for w, _ in params])
    # Hidden dims -> multiples of 128 (lane-dense intermediates).  The network
    # input (first K) and output (last N) dims stay unpadded so the wrapper
    # never has to copy/pad x or slice the result.
    pdims = (dims[0],) + tuple(_round_up(d, LANE) for d in dims[1:-1]) + (dims[-1],)
    arrays = []
    for li, (w, b) in enumerate(params):
        din, dout = w.shape
        pin, pout = pdims[li], pdims[li + 1]
        wp = jnp.zeros((pin, pout), compute_dtype).at[:din, :dout].set(
            w.astype(compute_dtype))
        bp = jnp.zeros((1, pout), jnp.float32).at[:, :dout].set(
            b.reshape(1, -1).astype(jnp.float32))
        arrays += [wp, bp]
    return PackedParams(tuple(arrays), dims, pdims, jnp.dtype(compute_dtype))


# ---------------------------------------------------------------------------
# Kernel
# ---------------------------------------------------------------------------
def _generator_kernel(x_ref,
                      w1_ref, b1_ref, w2_ref, b2_ref, w3_ref, b3_ref,
                      w4_ref, b4_ref, wo_ref, bo_ref,
                      o_ref):
    """One batch tile of the 5-layer MLP; weights/biases are VMEM-resident."""
    cdt = w1_ref.dtype          # MXU operand dtype (bf16 default, f32 escape hatch)

    def dense(h, w_ref, b_ref):
        # MXU matmul with f32 accumulation + f32 bias add.
        return jnp.dot(h, w_ref[...], preferred_element_type=jnp.float32) + b_ref[...]

    h = x_ref[...].astype(cdt)  # cast in-kernel: x streamed in its input dtype
    h = jnp.maximum(dense(h, w1_ref, b1_ref), 0.0).astype(cdt)
    h = jnp.maximum(dense(h, w2_ref, b2_ref), 0.0).astype(cdt)
    h = jnp.maximum(dense(h, w3_ref, b3_ref), 0.0).astype(cdt)
    h = jnp.maximum(dense(h, w4_ref, b4_ref), 0.0).astype(cdt)
    o_ref[...] = dense(h, wo_ref, bo_ref).astype(o_ref.dtype)


def _build_pallas_call(B, tm, pdims, x_dtype, out_dtype, arrays,
                       single_buffer_weights):
    grid = (pl.cdiv(B, tm),)
    g_in, g_out = pdims[0], pdims[-1]

    x_spec = pl.BlockSpec((tm, g_in), lambda i: (i, 0))
    out_spec = pl.BlockSpec((tm, g_out), lambda i: (i, 0))

    def resident(shape):
        # Constant index map -> operand stays VMEM-resident across grid steps.
        # Single-buffering skips a useless second VMEM copy of every weight.
        if single_buffer_weights:
            return pl.BlockSpec(shape, lambda i: (0, 0),
                                pipeline_mode=pl.Buffered(1))
        return pl.BlockSpec(shape, lambda i: (0, 0))

    wb_specs = []
    for li in range(N_LAYERS):
        wb_specs.append(resident((pdims[li], pdims[li + 1])))   # weight
        wb_specs.append(resident((1, pdims[li + 1])))           # bias

    # Explicit VMEM budget (v5e's default scoped limit is only 16 MiB).
    wb_bytes = sum(int(a.size) * a.dtype.itemsize for a in arrays)
    x_tile = tm * g_in * jnp.dtype(x_dtype).itemsize
    o_tile = tm * g_out * jnp.dtype(out_dtype).itemsize
    act_headroom = 4 * tm * max(pdims) * 4          # f32 intermediates
    need = 2 * (x_tile + o_tile) + 2 * wb_bytes + act_headroom
    vmem_limit = int(min(64 << 20, max(32 << 20, 2 * need)))

    flops = 2 * B * sum(pdims[i] * pdims[i + 1] for i in range(N_LAYERS))
    bytes_accessed = (B * g_in * jnp.dtype(x_dtype).itemsize + wb_bytes
                      + B * g_out * jnp.dtype(out_dtype).itemsize)

    return pl.pallas_call(
        _generator_kernel,
        out_shape=jax.ShapeDtypeStruct((B, g_out), out_dtype),
        grid=grid,
        in_specs=[x_spec] + wb_specs,
        out_specs=out_spec,
        compiler_params=pltpu.CompilerParams(
            dimension_semantics=("parallel",),   # shard batch over v7x's 2 TCs
            vmem_limit_bytes=vmem_limit),
        cost_estimate=pl.CostEstimate(flops=int(flops), transcendentals=0,
                                      bytes_accessed=int(bytes_accessed)),
    )


# ---------------------------------------------------------------------------
# Forward wrapper
# ---------------------------------------------------------------------------
def generator_forward(x, packed: PackedParams, *, tile_m=1024,
                      out_dtype=jnp.float32, backend="auto",
                      small_batch_threshold=SMALL_BATCH_THRESHOLD):
    """x: (B, G_in).  packed: PackedParams from pack_params().  -> (B, G_out).
    out_dtype can be set to bf16 to halve the output HBM stream if downstream
    consumers tolerate it (f32 accumulation is kept inside regardless)."""
    B, G_in = x.shape
    assert G_in == packed.dims[0], "input width mismatch"
    cdt = packed.compute_dtype

    if backend == "auto":
        backend = "pallas" if B >= small_batch_threshold else "xla"

    if backend == "xla":
        # Small-batch fallback: the whole problem is a single tiny tile, so
        # kernel launch + pipeline prologue dominates; let XLA fuse the chain
        # (ideally under the caller's jit so this folds into one fusion).
        h = x.astype(cdt)
        out = None
        for li in range(N_LAYERS):
            w, b = packed.arrays[2 * li], packed.arrays[2 * li + 1]
            acc = jnp.dot(h, w, preferred_element_type=jnp.float32) + b
            if li < N_LAYERS - 1:
                h = jnp.maximum(acc, 0.0).astype(cdt)
            else:
                out = acc
        return out.astype(out_dtype)

    # ---- Pallas path ------------------------------------------------------
    # Batch tiling: one full-height block when the batch fits in a single tile
    # (block == full array rows, always legal), otherwise ROW_ALIGN-aligned
    # tiles with a partial (masked) last block -- no batch-padding copy of x.
    if B <= tile_m:
        tm = B
    else:
        tm = _round_up(tile_m, ROW_ALIGN)
    # v7x has two TensorCores; "parallel" sharding needs >= 2 grid steps.
    if pl.cdiv(B, tm) < 2 and B >= 2 * 256:
        tm = _round_up(pl.cdiv(B, 2), ROW_ALIGN)

    def run(single_buffer_weights):
        call = _build_pallas_call(B, tm, packed.pdims, x.dtype, out_dtype,
                                  packed.arrays, single_buffer_weights)
        return call(x, *packed.arrays)

    try:
        return run(True)
    except Exception:
        # Fallback if this jax build rejects pipeline_mode=pl.Buffered(1) on
        # top-level BlockSpecs (only costs ~170 KiB of duplicated weights).
        return run(False)


# ---------------------------------------------------------------------------
# Reference / init helpers
# ---------------------------------------------------------------------------
def init_linear(key, fan_in, fan_out):
    # PyTorch nn.Linear default init: U(-1/sqrt(fan_in), +1/sqrt(fan_in)).
    # TODO(synk): the module's weight_init() applies xavier_uniform_ (including
    # on 1-D biases, which PyTorch rejects); init does not affect forward math.
    kw, kb = jax.random.split(key)
    bound = 1.0 / math.sqrt(fan_in)
    w = jax.random.uniform(kw, (fan_in, fan_out), jnp.float32, -bound, bound)
    b = jax.random.uniform(kb, (fan_out,), jnp.float32, -bound, bound)
    return w, b


def generator_reference(x, params, compute_dtype=jnp.float32):
    """Pure-JAX reference mirroring the kernel's operand dtype."""
    precision = (jax.lax.Precision.HIGHEST
                 if jnp.dtype(compute_dtype) == jnp.dtype(jnp.float32) else None)
    h = x.astype(compute_dtype)
    out = None
    for li, (w, b) in enumerate(params):
        acc = jnp.dot(h, w.astype(compute_dtype),
                      preferred_element_type=jnp.float32,
                      precision=precision) + b.reshape(1, -1)
        if li < len(params) - 1:
            h = jnp.maximum(acc, 0.0).astype(compute_dtype)
        else:
            out = acc
    return out


if __name__ == "__main__":
    # generator(G_in, G_out, w1, w2, w3, w4) at small shapes.
    B, G_in, W1, W2, W3, W4, G_out = 8, 32, 64, 64, 48, 32, 16

    key = jax.random.PRNGKey(0)
    kx, k1, k2, k3, k4, k5, kbig = jax.random.split(key, 7)

    x = jax.random.normal(kx, (B, G_in), dtype=jnp.float32)
    params = [
        init_linear(k1, G_in, W1),
        init_linear(k2, W1, W2),
        init_linear(k3, W2, W3),
        init_linear(k4, W3, W4),
        init_linear(k5, W4, G_out),
    ]

    packed_f32 = pack_params(params, compute_dtype=jnp.float32)
    packed_bf16 = pack_params(params, compute_dtype=jnp.bfloat16)

    # 1) f32-operand Pallas kernel (forced) vs f32 reference.
    out_f32 = jax.block_until_ready(
        generator_forward(x, packed_f32, backend="pallas"))
    ref_f32 = generator_reference(x, params, compute_dtype=jnp.float32)
    assert out_f32.shape == (B, G_out)
    assert jnp.allclose(out_f32, ref_f32, atol=5e-3, rtol=5e-3)

    # 2) default bf16-operand / f32-accumulate Pallas kernel (forced).
    out_bf16 = jax.block_until_ready(
        generator_forward(x, packed_bf16, backend="pallas"))
    ref_bf16 = generator_reference(x, params, compute_dtype=jnp.bfloat16)
    assert out_bf16.shape == (B, G_out)
    assert jnp.allclose(out_bf16, ref_bf16, atol=1e-2, rtol=1e-2)

    # 3) auto dispatch at this tiny batch takes the XLA fallback path.
    out_auto = jax.block_until_ready(generator_forward(x, packed_bf16))
    assert jnp.allclose(out_auto, ref_bf16, atol=1e-2, rtol=1e-2)

    # 4) larger batch through the Pallas path: >= 2 grid steps (v7x megacore)
    #    and a partial (masked) last block -- no batch-padding copy of x.
    B_big = 1500
    x_big = jax.random.normal(kbig, (B_big, G_in), dtype=jnp.float32)
    out_big = jax.block_until_ready(generator_forward(x_big, packed_bf16))
    ref_big = generator_reference(x_big, params, compute_dtype=jnp.bfloat16)
    assert out_big.shape == (B_big, G_out)
    assert jnp.allclose(out_big, ref_big, atol=1e-2, rtol=1e-2)

    print("KERNEL_OK")
</pallas_src>

<mosaic_0001>
module attributes {stable_mosaic.version = 11 : i64} {
  func.func @_generator_kernel(%arg0: i32, %arg1: memref<8x32xf32, #tpu.memory_space<vmem>>, %arg2: memref<32x128xf32, #tpu.memory_space<vmem>>, %arg3: memref<1x128xf32, #tpu.memory_space<vmem>>, %arg4: memref<128x128xf32, #tpu.memory_space<vmem>>, %arg5: memref<1x128xf32, #tpu.memory_space<vmem>>, %arg6: memref<128x128xf32, #tpu.memory_space<vmem>>, %arg7: memref<1x128xf32, #tpu.memory_space<vmem>>, %arg8: memref<128x128xf32, #tpu.memory_space<vmem>>, %arg9: memref<1x128xf32, #tpu.memory_space<vmem>>, %arg10: memref<128x16xf32, #tpu.memory_space<vmem>>, %arg11: memref<1x16xf32, #tpu.memory_space<vmem>>, %arg12: memref<8x16xf32, #tpu.memory_space<vmem>>) attributes {dimension_semantics = [#tpu.dimension_semantics<parallel>], iteration_bounds = array<i64: 1>, scalar_prefetch = 0 : i64, scratch_operands = 0 : i64, tpu.core_type = #tpu.core_type<tc>, window_params = [{transform_indices = @transform_0, window_bounds = array<i64: 8, 32>}, {pipeline_mode = #tpu.pipeline_mode<synchronous>, transform_indices = @transform_1, window_bounds = array<i64: 32, 128>}, {pipeline_mode = #tpu.pipeline_mode<synchronous>, transform_indices = @transform_2, window_bounds = array<i64: 1, 128>}, {pipeline_mode = #tpu.pipeline_mode<synchronous>, transform_indices = @transform_3, window_bounds = array<i64: 128, 128>}, {pipeline_mode = #tpu.pipeline_mode<synchronous>, transform_indices = @transform_4, window_bounds = array<i64: 1, 128>}, {pipeline_mode = #tpu.pipeline_mode<synchronous>, transform_indices = @transform_5, window_bounds = array<i64: 128, 128>}, {pipeline_mode = #tpu.pipeline_mode<synchronous>, transform_indices = @transform_6, window_bounds = array<i64: 1, 128>}, {pipeline_mode = #tpu.pipeline_mode<synchronous>, transform_indices = @transform_7, window_bounds = array<i64: 128, 128>}, {pipeline_mode = #tpu.pipeline_mode<synchronous>, transform_indices = @transform_8, window_bounds = array<i64: 1, 128>}, {pipeline_mode = #tpu.pipeline_mode<synchronous>, transform_indices = @transform_9, window_bounds = array<i64: 128, 16>}, {pipeline_mode = #tpu.pipeline_mode<synchronous>, transform_indices = @transform_10, window_bounds = array<i64: 1, 16>}, {transform_indices = @transform_11, window_bounds = array<i64: 8, 16>}]} {
    %c0 = arith.constant 0 : index
    %c0_0 = arith.constant 0 : index
    %0 = vector.load %arg1[%c0, %c0_0] : memref<8x32xf32, #tpu.memory_space<vmem>>, vector<8x32xf32>
    %c0_1 = arith.constant 0 : index
    %c0_2 = arith.constant 0 : index
    %1 = vector.load %arg2[%c0_1, %c0_2] : memref<32x128xf32, #tpu.memory_space<vmem>>, vector<32x128xf32>
    %cst = arith.constant dense<0.000000e+00> : vector<8x128xf32>
    %2 = tpu.matmul %0, %1, %cst {dimension_numbers = #tpu.dot_dimension_numbers<[1], [0], [0], [1], [0, 0, 1, 1], [], []>} : vector<8x32xf32>, vector<32x128xf32>, vector<8x128xf32> -> vector<8x128xf32>
    %c0_3 = arith.constant 0 : index
    %c0_4 = arith.constant 0 : index
    %3 = vector.load %arg3[%c0_3, %c0_4] : memref<1x128xf32, #tpu.memory_space<vmem>>, vector<1x128xf32>
    %4 = vector.broadcast %3 : vector<1x128xf32> to vector<8x128xf32>
    %5 = arith.addf %2, %4 : vector<8x128xf32>
    %cst_5 = arith.constant 0.000000e+00 : f32
    %6 = vector.broadcast %cst_5 : f32 to vector<8x128xf32>
    %7 = arith.maximumf %5, %6 : vector<8x128xf32>
    %c0_6 = arith.constant 0 : index
    %c0_7 = arith.constant 0 : index
    %8 = vector.load %arg4[%c0_6, %c0_7] : memref<128x128xf32, #tpu.memory_space<vmem>>, vector<128x128xf32>
    %cst_8 = arith.constant dense<0.000000e+00> : vector<8x128xf32>
    %9 = tpu.matmul %7, %8, %cst_8 {dimension_numbers = #tpu.dot_dimension_numbers<[1], [0], [0], [1], [0, 0, 1, 1], [], []>} : vector<8x128xf32>, vector<128x128xf32>, vector<8x128xf32> -> vector<8x128xf32>
    %c0_9 = arith.constant 0 : index
    %c0_10 = arith.constant 0 : index
    %10 = vector.load %arg5[%c0_9, %c0_10] : memref<1x128xf32, #tpu.memory_space<vmem>>, vector<1x128xf32>
    %11 = vector.broadcast %10 : vector<1x128xf32> to vector<8x128xf32>
    %12 = arith.addf %9, %11 : vector<8x128xf32>
    %cst_11 = arith.constant 0.000000e+00 : f32
    %13 = vector.broadcast %cst_11 : f32 to vector<8x128xf32>
    %14 = arith.maximumf %12, %13 : vector<8x128xf32>
    %c0_12 = arith.constant 0 : index
    %c0_13 = arith.constant 0 : index
    %15 = vector.load %arg6[%c0_12, %c0_13] : memref<128x128xf32, #tpu.memory_space<vmem>>, vector<128x128xf32>
    %cst_14 = arith.constant dense<0.000000e+00> : vector<8x128xf32>
    %16 = tpu.matmul %14, %15, %cst_14 {dimension_numbers = #tpu.dot_dimension_numbers<[1], [0], [0], [1], [0, 0, 1, 1], [], []>} : vector<8x128xf32>, vector<128x128xf32>, vector<8x128xf32> -> vector<8x128xf32>
    %c0_15 = arith.constant 0 : index
    %c0_16 = arith.constant 0 : index
    %17 = vector.load %arg7[%c0_15, %c0_16] : memref<1x128xf32, #tpu.memory_space<vmem>>, vector<1x128xf32>
    %18 = vector.broadcast %17 : vector<1x128xf32> to vector<8x128xf32>
    %19 = arith.addf %16, %18 : vector<8x128xf32>
    %cst_17 = arith.constant 0.000000e+00 : f32
    %20 = vector.broadcast %cst_17 : f32 to vector<8x128xf32>
    %21 = arith.maximumf %19, %20 : vector<8x128xf32>
    %c0_18 = arith.constant 0 : index
    %c0_19 = arith.constant 0 : index
    %22 = vector.load %arg8[%c0_18, %c0_19] : memref<128x128xf32, #tpu.memory_space<vmem>>, vector<128x128xf32>
    %cst_20 = arith.constant dense<0.000000e+00> : vector<8x128xf32>
    %23 = tpu.matmul %21, %22, %cst_20 {dimension_numbers = #tpu.dot_dimension_numbers<[1], [0], [0], [1], [0, 0, 1, 1], [], []>} : vector<8x128xf32>, vector<128x128xf32>, vector<8x128xf32> -> vector<8x128xf32>
    %c0_21 = arith.constant 0 : index
    %c0_22 = arith.constant 0 : index
    %24 = vector.load %arg9[%c0_21, %c0_22] : memref<1x128xf32, #tpu.memory_space<vmem>>, vector<1x128xf32>
    %25 = vector.broadcast %24 : vector<1x128xf32> to vector<8x128xf32>
    %26 = arith.addf %23, %25 : vector<8x128xf32>
    %cst_23 = arith.constant 0.000000e+00 : f32
    %27 = vector.broadcast %cst_23 : f32 to vector<8x128xf32>
    %28 = arith.maximumf %26, %27 : vector<8x128xf32>
    %c0_24 = arith.constant 0 : index
    %c0_25 = arith.constant 0 : index
    %29 = vector.load %arg10[%c0_24, %c0_25] : memref<128x16xf32, #tpu.memory_space<vmem>>, vector<128x16xf32>
    %cst_26 = arith.constant dense<0.000000e+00> : vector<8x16xf32>
    %30 = tpu.matmul %28, %29, %cst_26 {dimension_numbers = #tpu.dot_dimension_numbers<[1], [0], [0], [1], [0, 0, 1, 1], [], []>} : vector<8x128xf32>, vector<128x16xf32>, vector<8x16xf32> -> vector<8x16xf32>
    %c0_27 = arith.constant 0 : index
    %c0_28 = arith.constant 0 : index
    %31 = vector.load %arg11[%c0_27, %c0_28] : memref<1x16xf32, #tpu.memory_space<vmem>>, vector<1x16xf32>
    %32 = vector.broadcast %31 : vector<1x16xf32> to vector<8x16xf32>
    %33 = arith.addf %30, %32 : vector<8x16xf32>
    %c0_29 = arith.constant 0 : index
    %c0_30 = arith.constant 0 : index
    %34 = vector.load %arg12[%c0_29, %c0_30] : memref<8x16xf32, #tpu.memory_space<vmem>>, vector<8x16xf32>
    tpu.vector_store %arg12[%c0_29, %c0_30], %33 {strides = array<i32>} : memref<8x16xf32, #tpu.memory_space<vmem>>, vector<8x16xf32>,
    return
  }
  func.func @transform_0(%arg0: i32) -> (i32, i32) {
    %c0_i32 = arith.constant 0 : i32
    %c0_i32_0 = arith.constant 0 : i32
    return %arg0, %c0_i32 : i32, i32
  }
  func.func @transform_1(%arg0: i32) -> (i32, i32) {
    %c0_i32 = arith.constant 0 : i32
    %c0_i32_0 = arith.constant 0 : i32
    %c0_i32_1 = arith.constant 0 : i32
    return %c0_i32, %c0_i32_0 : i32, i32
  }
  func.func @transform_2(%arg0: i32) -> (i32, i32) {
    %c0_i32 = arith.constant 0 : i32
    %c0_i32_0 = arith.constant 0 : i32
    %c0_i32_1 = arith.constant 0 : i32
    return %c0_i32, %c0_i32_0 : i32, i32
  }
  func.func @transform_3(%arg0: i32) -> (i32, i32) {
    %c0_i32 = arith.constant 0 : i32
    %c0_i32_0 = arith.constant 0 : i32
    %c0_i32_1 = arith.constant 0 : i32
    return %c0_i32, %c0_i32_0 : i32, i32
  }
  func.func @transform_4(%arg0: i32) -> (i32, i32) {
    %c0_i32 = arith.constant 0 : i32
    %c0_i32_0 = arith.constant 0 : i32
    %c0_i32_1 = arith.constant 0 : i32
    return %c0_i32, %c0_i32_0 : i32, i32
  }
  func.func @transform_5(%arg0: i32) -> (i32, i32) {
    %c0_i32 = arith.constant 0 : i32
    %c0_i32_0 = arith.constant 0 : i32
    %c0_i32_1 = arith.constant 0 : i32
    return %c0_i32, %c0_i32_0 : i32, i32
  }
  func.func @transform_6(%arg0: i32) -> (i32, i32) {
    %c0_i32 = arith.constant 0 : i32
    %c0_i32_0 = arith.constant 0 : i32
    %c0_i32_1 = arith.constant 0 : i32
    return %c0_i32, %c0_i32_0 : i32, i32
  }
  func.func @transform_7(%arg0: i32) -> (i32, i32) {
    %c0_i32 = arith.constant 0 : i32
    %c0_i32_0 = arith.constant 0 : i32
    %c0_i32_1 = arith.constant 0 : i32
    return %c0_i32, %c0_i32_0 : i32, i32
  }
  func.func @transform_8(%arg0: i32) -> (i32, i32) {
    %c0_i32 = arith.constant 0 : i32
    %c0_i32_0 = arith.constant 0 : i32
    %c0_i32_1 = arith.constant 0 : i32
    return %c0_i32, %c0_i32_0 : i32, i32
  }
  func.func @transform_9(%arg0: i32) -> (i32, i32) {
    %c0_i32 = arith.constant 0 : i32
    %c0_i32_0 = arith.constant 0 : i32
    %c0_i32_1 = arith.constant 0 : i32
    return %c0_i32, %c0_i32_0 : i32, i32
  }
  func.func @transform_10(%arg0: i32) -> (i32, i32) {
    %c0_i32 = arith.constant 0 : i32
    %c0_i32_0 = arith.constant 0 : i32
    %c0_i32_1 = arith.constant 0 : i32
    return %c0_i32, %c0_i32_0 : i32, i32
  }
  func.func @transform_11(%arg0: i32) -> (i32, i32) {
    %c0_i32 = arith.constant 0 : i32
    %c0_i32_0 = arith.constant 0 : i32
    return %arg0, %c0_i32 : i32, i32
  }
}

module attributes {stable_mosaic.version = 11 : i64} {
  func.func @_generator_kernel(%arg0: i32, %arg1: memref<8x32xf32, #tpu.memory_space<vmem>>, %arg2: memref<32x128xf32, #tpu.memory_space<vmem>>, %arg3: memref<1x128xf32, #tpu.memory_space<vmem>>, %arg4: memref<128x128xf32, #tpu.memory_space<vmem>>, %arg5: memref<1x128xf32, #tpu.memory_space<vmem>>, %arg6: memref<128x128xf32, #tpu.memory_space<vmem>>, %arg7: memref<1x128xf32, #tpu.memory_space<vmem>>, %arg8: memref<128x128xf32, #tpu.memory_space<vmem>>, %arg9: memref<1x128xf32, #tpu.memory_space<vmem>>, %arg10: memref<128x16xf32, #tpu.memory_space<vmem>>, %arg11: memref<1x16xf32, #tpu.memory_space<vmem>>, %arg12: memref<8x16xf32, #tpu.memory_space<vmem>>) attributes {dimension_semantics = [#tpu.dimension_semantics<parallel>], iteration_bounds = array<i64: 1>, scalar_prefetch = 0 : i64, scratch_operands = 0 : i64, tpu.core_type = #tpu.core_type<tc>, window_params = [{transform_indices = @transform_0, window_bounds = array<i64: 8, 32>}, {pipeline_mode = #tpu.pipeline_mode<synchronous>, transform_indices = @transform_1, window_bounds = array<i64: 32, 128>}, {pipeline_mode = #tpu.pipeline_mode<synchronous>, transform_indices = @transform_2, window_bounds = array<i64: 1, 128>}, {pipeline_mode = #tpu.pipeline_mode<synchronous>, transform_indices = @transform_3, window_bounds = array<i64: 128, 128>}, {pipeline_mode = #tpu.pipeline_mode<synchronous>, transform_indices = @transform_4, window_bounds = array<i64: 1, 128>}, {pipeline_mode = #tpu.pipeline_mode<synchronous>, transform_indices = @transform_5, window_bounds = array<i64: 128, 128>}, {pipeline_mode = #tpu.pipeline_mode<synchronous>, transform_indices = @transform_6, window_bounds = array<i64: 1, 128>}, {pipeline_mode = #tpu.pipeline_mode<synchronous>, transform_indices = @transform_7, window_bounds = array<i64: 128, 128>}, {pipeline_mode = #tpu.pipeline_mode<synchronous>, transform_indices = @transform_8, window_bounds = array<i64: 1, 128>}, {pipeline_mode = #tpu.pipeline_mode<synchronous>, transform_indices = @transform_9, window_bounds = array<i64: 128, 16>}, {pipeline_mode = #tpu.pipeline_mode<synchronous>, transform_indices = @transform_10, window_bounds = array<i64: 1, 16>}, {transform_indices = @transform_11, window_bounds = array<i64: 8, 16>}]} {
    %c0 = arith.constant 0 : index
    %c0_0 = arith.constant 0 : index
    %0 = vector.load %arg1[%c0, %c0_0] : memref<8x32xf32, #tpu.memory_space<vmem>>, vector<8x32xf32>
    %c0_1 = arith.constant 0 : index
    %c0_2 = arith.constant 0 : index
    %1 = vector.load %arg2[%c0_1, %c0_2] : memref<32x128xf32, #tpu.memory_space<vmem>>, vector<32x128xf32>
    %cst = arith.constant dense<0.000000e+00> : vector<8x128xf32>
    %2 = tpu.matmul %0, %1, %cst {dimension_numbers = #tpu.dot_dimension_numbers<[1], [0], [0], [1], [0, 0, 1, 1], [], []>} : vector<8x32xf32>, vector<32x128xf32>, vector<8x128xf32> -> vector<8x128xf32>
    %c0_3 = arith.constant 0 : index
    %c0_4 = arith.constant 0 : index
    %3 = vector.load %arg3[%c0_3, %c0_4] : memref<1x128xf32, #tpu.memory_space<vmem>>, vector<1x128xf32>
    %4 = vector.broadcast %3 : vector<1x128xf32> to vector<8x128xf32>
    %5 = arith.addf %2, %4 : vector<8x128xf32>
    %cst_5 = arith.constant 0.000000e+00 : f32
    %6 = vector.broadcast %cst_5 : f32 to vector<8x128xf32>
    %7 = arith.maximumf %5, %6 : vector<8x128xf32>
    %c0_6 = arith.constant 0 : index
    %c0_7 = arith.constant 0 : index
    %8 = vector.load %arg4[%c0_6, %c0_7] : memref<128x128xf32, #tpu.memory_space<vmem>>, vector<128x128xf32>
    %cst_8 = arith.constant dense<0.000000e+00> : vector<8x128xf32>
    %9 = tpu.matmul %7, %8, %cst_8 {dimension_numbers = #tpu.dot_dimension_numbers<[1], [0], [0], [1], [0, 0, 1, 1], [], []>} : vector<8x128xf32>, vector<128x128xf32>, vector<8x128xf32> -> vector<8x128xf32>
    %c0_9 = arith.constant 0 : index
    %c0_10 = arith.constant 0 : index
    %10 = vector.load %arg5[%c0_9, %c0_10] : memref<1x128xf32, #tpu.memory_space<vmem>>, vector<1x128xf32>
    %11 = vector.broadcast %10 : vector<1x128xf32> to vector<8x128xf32>
    %12 = arith.addf %9, %11 : vector<8x128xf32>
    %cst_11 = arith.constant 0.000000e+00 : f32
    %13 = vector.broadcast %cst_11 : f32 to vector<8x128xf32>
    %14 = arith.maximumf %12, %13 : vector<8x128xf32>
    %c0_12 = arith.constant 0 : index
    %c0_13 = arith.constant 0 : index
    %15 = vector.load %arg6[%c0_12, %c0_13] : memref<128x128xf32, #tpu.memory_space<vmem>>, vector<128x128xf32>
    %cst_14 = arith.constant dense<0.000000e+00> : vector<8x128xf32>
    %16 = tpu.matmul %14, %15, %cst_14 {dimension_numbers = #tpu.dot_dimension_numbers<[1], [0], [0], [1], [0, 0, 1, 1], [], []>} : vector<8x128xf32>, vector<128x128xf32>, vector<8x128xf32> -> vector<8x128xf32>
    %c0_15 = arith.constant 0 : index
    %c0_16 = arith.constant 0 : index
    %17 = vector.load %arg7[%c0_15, %c0_16] : memref<1x128xf32, #tpu.memory_space<vmem>>, vector<1x128xf32>
    %18 = vector.broadcast %17 : vector<1x128xf32> to vector<8x128xf32>
    %19 = arith.addf %16, %18 : vector<8x128xf32>
    %cst_17 = arith.constant 0.000000e+00 : f32
    %20 = vector.broadcast %cst_17 : f32 to vector<8x128xf32>
    %21 = arith.maximumf %19, %20 : vector<8x128xf32>
    %c0_18 = arith.constant 0 : index
    %c0_19 = arith.constant 0 : index
    %22 = vector.load %arg8[%c0_18, %c0_19] : memref<128x128xf32, #tpu.memory_space<vmem>>, vector<128x128xf32>
    %cst_20 = arith.constant dense<0.000000e+00> : vector<8x128xf32>
    %23 = tpu.matmul %21, %22, %cst_20 {dimension_numbers = #tpu.dot_dimension_numbers<[1], [0], [0], [1], [0, 0, 1, 1], [], []>} : vector<8x128xf32>, vector<128x128xf32>, vector<8x128xf32> -> vector<8x128xf32>
    %c0_21 = arith.constant 0 : index
    %c0_22 = arith.constant 0 : index
    %24 = vector.load %arg9[%c0_21, %c0_22] : memref<1x128xf32, #tpu.memory_space<vmem>>, vector<1x128xf32>
    %25 = vector.broadcast %24 : vector<1x128xf32> to vector<8x128xf32>
    %26 = arith.addf %23, %25 : vector<8x128xf32>
    %cst_23 = arith.constant 0.000000e+00 : f32
    %27 = vector.broadcast %cst_23 : f32 to vector<8x128xf32>
    %28 = arith.maximumf %26, %27 : vector<8x128xf32>
    %c0_24 = arith.constant 0 : index
    %c0_25 = arith.constant 0 : index
    %29 = vector.load %arg10[%c0_24, %c0_25] : memref<128x16xf32, #tpu.memory_space<vmem>>, vector<128x16xf32>
    %cst_26 = arith.constant dense<0.000000e+00> : vector<8x16xf32>
    %30 = tpu.matmul %28, %29, %cst_26 {dimension_numbers = #tpu.dot_dimension_numbers<[1], [0], [0], [1], [0, 0, 1, 1], [], []>} : vector<8x128xf32>, vector<128x16xf32>, vector<8x16xf32> -> vector<8x16xf32>
    %c0_27 = arith.constant 0 : index
    %c0_28 = arith.constant 0 : index
    %31 = vector.load %arg11[%c0_27, %c0_28] : memref<1x16xf32, #tpu.memory_space<vmem>>, vector<1x16xf32>
    %32 = vector.broadcast %31 : vector<1x16xf32> to vector<8x16xf32>
    %33 = arith.addf %30, %32 : vector<8x16xf32>
    %c0_29 = arith.constant 0 : index
    %c0_30 = arith.constant 0 : index
    %34 = vector.load %arg12[%c0_29, %c0_30] : memref<8x16xf32, #tpu.memory_space<vmem>>, vector<8x16xf32>
    tpu.vector_store %arg12[%c0_29, %c0_30], %33 {strides = array<i32>} : memref<8x16xf32, #tpu.memory_space<vmem>>, vector<8x16xf32>,
    return
  }
  func.func @transform_0(%arg0: i32) -> (i32, i32) {
    %c0_i32 = arith.constant 0 : i32
    %c0_i32_0 = arith.constant 0 : i32
    return %arg0, %c0_i32 : i32, i32
  }
  func.func @transform_1(%arg0: i32) -> (i32, i32) {
    %c0_i32 = arith.constant 0 : i32
    %c0_i32_0 = arith.constant 0 : i32
    %c0_i32_1 = arith.constant 0 : i32
    return %c0_i32, %c0_i32_0 : i32, i32
  }
  func.func @transform_2(%arg0: i32) -> (i32, i32) {
    %c0_i32 = arith.constant 0 : i32
    %c0_i32_0 = arith.constant 0 : i32
    %c0_i32_1 = arith.constant 0 : i32
    return %c0_i32, %c0_i32_0 : i32, i32
  }
  func.func @transform_3(%arg0: i32) -> (i32, i32) {
    %c0_i32 = arith.constant 0 : i32
    %c0_i32_0 = arith.constant 0 : i32
    %c0_i32_1 = arith.constant 0 : i32
    return %c0_i32, %c0_i32_0 : i32, i32
  }
  func.func @transform_4(%arg0: i32) -> (i32, i32) {
    %c0_i32 = arith.constant 0 : i32
    %c0_i32_0 = arith.constant 0 : i32
    %c0_i32_1 = arith.constant 0 : i32
    return %c0_i32, %c0_i32_0 : i32, i32
  }
  func.func @transform_5(%arg0: i32) -> (i32, i32) {
    %c0_i32 = arith.constant 0 : i32
    %c0_i32_0 = arith.constant 0 : i32
    %c0_i32_1 = arith.constant 0 : i32
    return %c0_i32, %c0_i32_0 : i32, i32
  }
  func.func @transform_6(%arg0: i32) -> (i32, i32) {
    %c0_i32 = arith.constant 0 : i32
    %c0_i32_0 = arith.constant 0 : i32
    %c0_i32_1 = arith.constant 0 : i32
    return %c0_i32, %c0_i32_0 : i32, i32
  }
  func.func @transform_7(%arg0: i32) -> (i32, i32) {
    %c0_i32 = arith.constant 0 : i32
    %c0_i32_0 = arith.constant 0 : i32
    %c0_i32_1 = arith.constant 0 : i32
    return %c0_i32, %c0_i32_0 : i32, i32
  }
  func.func @transform_8(%arg0: i32) -> (i32, i32) {
    %c0_i32 = arith.constant 0 : i32
    %c0_i32_0 = arith.constant 0 : i32
    %c0_i32_1 = arith.constant 0 : i32
    return %c0_i32, %c0_i32_0 : i32, i32
  }
  func.func @transform_9(%arg0: i32) -> (i32, i32) {
    %c0_i32 = arith.constant 0 : i32
    %c0_i32_0 = arith.constant 0 : i32
    %c0_i32_1 = arith.constant 0 : i32
    return %c0_i32, %c0_i32_0 : i32, i32
  }
  func.func @transform_10(%arg0: i32) -> (i32, i32) {
    %c0_i32 = arith.constant 0 : i32
    %c0_i32_0 = arith.constant 0 : i32
    %c0_i32_1 = arith.constant 0 : i32
    return %c0_i32, %c0_i32_0 : i32, i32
  }
  func.func @transform_11(%arg0: i32) -> (i32, i32) {
    %c0_i32 = arith.constant 0 : i32
    %c0_i32_0 = arith.constant 0 : i32
    return %arg0, %c0_i32 : i32, i32
  }
}

</mosaic_0001>

<llo_original>
// kernel: tpu_custom_call.1
$region0: #{tpu_custom_call.1}
  #allocation0 [shape = 'u32[]', space=smem, size = 0x4, offset = 0x4, fixed_abs, tag = 'smem constant byte address 0x4 - core index']
  #allocation1 [shape = 'u32[144,128]{1,0:T(1,128)}', space=vmem, size = 0x12000, scoped, tag = 'internal scratch']
  %s0 = inlined_call_operand.vmem [shape: f32[8,32], index: 0, kind: input, shape index: {}]
  %s1 = inlined_call_operand.hbm [shape: f32[32,128], index: 1, kind: input, shape index: {}]
  %s2 = inlined_call_operand.vmem [shape: f32[1,128], index: 2, kind: input, shape index: {}]
  %s3 = inlined_call_operand.vmem [shape: f32[128,128], index: 3, kind: input, shape index: {}]
  %s4 = inlined_call_operand.vmem [shape: f32[1,128], index: 4, kind: input, shape index: {}]
  %s5 = inlined_call_operand.hbm [shape: f32[128,128], index: 5, kind: input, shape index: {}]
  %s6 = inlined_call_operand.vmem [shape: f32[1,128], index: 6, kind: input, shape index: {}]
  %s7 = inlined_call_operand.hbm [shape: f32[128,128], index: 7, kind: input, shape index: {}]
  %s8 = inlined_call_operand.vmem [shape: f32[1,128], index: 8, kind: input, shape index: {}]
  %s9 = inlined_call_operand.vmem [shape: f32[128,16], index: 9, kind: input, shape index: {}]
  %s10 = inlined_call_operand.vmem [shape: f32[1,16], index: 10, kind: input, shape index: {}]
  %s11 = inlined_call_operand.hbm [shape: f32[8,16], index: 11, kind: output, shape index: {}]
  %s12 = sld [smem:[#allocation0]]
  $region66: #{tpu_custom_call.1} parent=0
    _
  %s14 = ssub.s32 1, %s12
  %s15 = scalar_select 0, %s14, %s12
  $region1: #{tpu_custom_call.1} parent=0
    #allocation2 [shape = 'u8[16384]{0}', space=vmem, size = 0x4000, scoped, tag = 'input window, operand 1, single buffered']
    #allocation3 [shape = 's32[1]{0}', space=sflag, size = 0x4, scoped, tag = 'scoped memory for tpu_custom_call.1']
    #allocation4 [shape = 's32[1]{0}', space=sflag, size = 0x4, scoped, tag = 'scoped memory for tpu_custom_call.1']
    #allocation5 [shape = 'u8[65536]{0}', space=vmem, size = 0x10000, scoped, tag = 'input window, operand 5, single buffered']
    #allocation6 [shape = 's32[1]{0}', space=sflag, size = 0x4, scoped, tag = 'scoped memory for tpu_custom_call.1']
    #allocation7 [shape = 'u8[65536]{0}', space=vmem, size = 0x10000, scoped, tag = 'input window, operand 7, single buffered']
    #allocation8 [shape = 'u8[4096]{0}', space=vmem, size = 0x1000, scoped, tag = 'output window, operand 0, single buffered']
    %16 = vsyncpa [#allocation3], 0
    %17 = vsyncpa [#allocation6], 0
    %18 = vsyncpa [#allocation4], 0
    // Predicated region
    $region2: #{tpu_custom_call.1} parent=1 // pred_check
      _
    $region3: #{tpu_custom_call.1} parent=1 // pred_check_branch
      %20 = sbr.rel (0) target = $region5
    $region4: #{tpu_custom_call.1} parent=1 // pred_region
      _
    $region5: #{tpu_custom_call.1} parent=1 // pred_fallthru
      _
    // Predicated region
    $region6: #{tpu_custom_call.1} parent=1 // pred_check
      _
    $region7: #{tpu_custom_call.1} parent=1 // pred_check_branch
      %22 = sbr.rel (0) target = $region9
    $region8: #{tpu_custom_call.1} parent=1 // pred_region
      %s24 = ssub.s32 512, 512
      %25 = vsyncadd [#allocation3], %s24
      %s26 = sshll.u32 [#allocation2], 4
      %s27 = int_to_ptr.vmem [resolvable:$true] %s26
      %32 = dma.hbm_to_vmem [thread:$0]  %s1, 512, %s27, [#allocation3], 128, 128, 8
    $region9: #{tpu_custom_call.1} parent=1 // pred_fallthru
      _
    // Predicated region
    $region10: #{tpu_custom_call.1} parent=1 // pred_check
      _
    $region11: #{tpu_custom_call.1} parent=1 // pred_check_branch
      %34 = sbr.rel (0) target = $region13
    $region12: #{tpu_custom_call.1} parent=1 // pred_region
      _
    $region13: #{tpu_custom_call.1} parent=1 // pred_fallthru
      _
    // Predicated region
    $region14: #{tpu_custom_call.1} parent=1 // pred_check
      _
    $region15: #{tpu_custom_call.1} parent=1 // pred_check_branch
      %36 = sbr.rel (0) target = $region17
    $region16: #{tpu_custom_call.1} parent=1 // pred_region
      _
    $region17: #{tpu_custom_call.1} parent=1 // pred_fallthru
      _
    // Predicated region
    $region18: #{tpu_custom_call.1} parent=1 // pred_check
      _
    $region19: #{tpu_custom_call.1} parent=1 // pred_check_branch
      %38 = sbr.rel (0) target = $region21
    $region20: #{tpu_custom_call.1} parent=1 // pred_region
      _
    $region21: #{tpu_custom_call.1} parent=1 // pred_fallthru
      _
    // Predicated region
    $region22: #{tpu_custom_call.1} parent=1 // pred_check
      _
    $region23: #{tpu_custom_call.1} parent=1 // pred_check_branch
      %40 = sbr.rel (0) target = $region25
    $region24: #{tpu_custom_call.1} parent=1 // pred_region
      %s42 = ssub.s32 2048, 2048
      %43 = vsyncadd [#allocation6], %s42
      %s44 = sshll.u32 [#allocation5], 4
      %s45 = int_to_ptr.vmem [resolvable:$true] %s44
      %50 = dma.hbm_to_vmem [thread:$0]  %s5, 2048, %s45, [#allocation6], 128, 128, 8
    $region25: #{tpu_custom_call.1} parent=1 // pred_fallthru
      _
    // Predicated region
    $region26: #{tpu_custom_call.1} parent=1 // pred_check
      _
    $region27: #{tpu_custom_call.1} parent=1 // pred_check_branch
      %52 = sbr.rel (0) target = $region29
    $region28: #{tpu_custom_call.1} parent=1 // pred_region
      _
    $region29: #{tpu_custom_call.1} parent=1 // pred_fallthru
      _
    // Predicated region
    $region30: #{tpu_custom_call.1} parent=1 // pred_check
      _
    $region31: #{tpu_custom_call.1} parent=1 // pred_check_branch
      %54 = sbr.rel (0) target = $region33
    $region32: #{tpu_custom_call.1} parent=1 // pred_region
      %s56 = ssub.s32 2048, 2048
      %57 = vsyncadd [#allocation6], %s56
      %s58 = sshll.u32 [#allocation7], 4
      %s59 = int_to_ptr.vmem [resolvable:$true] %s58
      %64 = dma.hbm_to_vmem [thread:$0]  %s7, 2048, %s59, [#allocation6], 128, 128, 8
    $region33: #{tpu_custom_call.1} parent=1 // pred_fallthru
      _
    // Predicated region
    $region34: #{tpu_custom_call.1} parent=1 // pred_check
      _
    $region35: #{tpu_custom_call.1} parent=1 // pred_check_branch
      %66 = sbr.rel (0) target = $region37
    $region36: #{tpu_custom_call.1} parent=1 // pred_region
      _
    $region37: #{tpu_custom_call.1} parent=1 // pred_fallthru
      _
    // Predicated region
    $region38: #{tpu_custom_call.1} parent=1 // pred_check
      _
    $region39: #{tpu_custom_call.1} parent=1 // pred_check_branch
      %68 = sbr.rel (0) target = $region41
    $region40: #{tpu_custom_call.1} parent=1 // pred_region
      _
    $region41: #{tpu_custom_call.1} parent=1 // pred_fallthru
      _
    // Predicated region
    $region42: #{tpu_custom_call.1} parent=1 // pred_check
      _
    $region43: #{tpu_custom_call.1} parent=1 // pred_check_branch
      %70 = sbr.rel (0) target = $region45
    $region44: #{tpu_custom_call.1} parent=1 // pred_region
      _
    $region45: #{tpu_custom_call.1} parent=1 // pred_fallthru
      _
    // Predicated region
    $region46: #{tpu_custom_call.1} parent=1 // pred_check
      _
    $region47: #{tpu_custom_call.1} parent=1 // pred_check_branch
      %72 = sbr.rel (0) target = $region49
    $region48: #{tpu_custom_call.1} parent=1 // pred_region
      %73 = dma.done [#allocation3], 512
    $region49: #{tpu_custom_call.1} parent=1 // pred_fallthru
      _
    // Predicated region
    $region50: #{tpu_custom_call.1} parent=1 // pred_check
      _
    $region51: #{tpu_custom_call.1} parent=1 // pred_check_branch
      %75 = sbr.rel (0) target = $region53
    $region52: #{tpu_custom_call.1} parent=1 // pred_region
      %76 = dma.done [#allocation6], 2048
    $region53: #{tpu_custom_call.1} parent=1 // pred_fallthru
      _
    // Predicated region
    $region54: #{tpu_custom_call.1} parent=1 // pred_check
      _
    $region55: #{tpu_custom_call.1} parent=1 // pred_check_branch
      %78 = sbr.rel (0) target = $region57
    $region56: #{tpu_custom_call.1} parent=1 // pred_region
      %79 = dma.done [#allocation6], 2048
    $region57: #{tpu_custom_call.1} parent=1 // pred_fallthru
      _
    %v80 = vld [vmem:[%s0] sm:$0xff]
    %v81 = vld [vmem:[#allocation2] sm:$0xff]
    %v82 = vld [vmem:[#allocation2 + $0x8] sm:$0xff]
    %v83 = vld [vmem:[#allocation2 + $0x10] sm:$0xff]
    %v84 = vld [vmem:[#allocation2 + $0x18] sm:$0xff]
    %v85 = vld [vmem:[%s2] sm:$0x1]
    %v87 = vlaneseq
    %v88 = vshrl.u32 %v87, 7
    %v89 = vsub.s32 0, %v88
    %v90 = vrot.slane %v85, %v89
    %vm92 = vcmask 261120
    %v94 = vsel %vm92, %v80, 0
    %96 = vmatprep.subr.mxu0 0.0
    %97 = vmatpush1.msra.mxu0 %v81
    %98 = vmatprep.subr.mxu0 0.0
    %99 = vmatpush1.msra.mxu0 %v82
    %100 = vmatprep.subr.mxu0 0.0
    %101 = vmatpush1.msra.mxu0 %v83
    %102 = vmatprep.subr.mxu0 0.0
    %103 = vmatpush1.msra.mxu0 %v84
    %104 = vmatprep.subr.mxu0 0.0
    %105 = vmatpush1.msra.mxu0 0.0
    %106 = vmatprep.subr.mxu0 0.0
    %107 = vmatpush1.msra.mxu0 0.0
    %108 = vmatprep.subr.mxu0 0.0
    %109 = vmatpush1.msra.mxu0 0.0
    %110 = vmatprep.subr.mxu0 0.0
    %111 = vmatpush1.msra.mxu0 0.0
    %112 = vmatprep.subr.mxu0 0.0
    %113 = vmatpush1.msra.mxu0 0.0
    %114 = vmatprep.subr.mxu0 0.0
    %115 = vmatpush1.msra.mxu0 0.0
    %116 = vmatprep.subr.mxu0 0.0
    %117 = vmatpush1.msra.mxu0 0.0
    %118 = vmatprep.subr.mxu0 0.0
    %119 = vmatpush1.msra.mxu0 0.0
    %120 = vmatprep.subr.mxu0 0.0
    %121 = vmatpush1.msra.mxu0 0.0
    %122 = vmatprep.subr.mxu0 0.0
    %123 = vmatpush1.msra.mxu0 0.0
    %124 = vmatprep.subr.mxu0 0.0
    %125 = vmatpush1.msra.mxu0 0.0
    %126 = vmatprep.subr.mxu0 0.0
    %127 = vmatpush1.msra.mxu0 0.0
    %128 = vmatprep.subr.mxu0 0.0
    %129 = vmatpush1.msra.mxu0 0.0
    %130 = vmatprep.subr.mxu0 0.0
    %131 = vmatpush1.msra.mxu0 0.0
    %132 = vmatprep.subr.mxu0 0.0
    %133 = vmatpush1.msra.mxu0 0.0
    %134 = vmatprep.subr.mxu0 0.0
    %135 = vmatpush1.msra.mxu0 0.0
    %136 = vmatprep.subr.mxu0 0.0
    %137 = vmatpush1.msra.mxu0 0.0
    %138 = vmatprep.subr.mxu0 0.0
    %139 = vmatpush1.msra.mxu0 0.0
    %140 = vmatprep.subr.mxu0 0.0
    %141 = vmatpush1.msra.mxu0 0.0
    %142 = vmatprep.subr.mxu0 0.0
    %143 = vmatpush1.msra.mxu0 0.0
    %144 = vmatprep.subr.mxu0 0.0
    %145 = vmatpush1.msra.mxu0 0.0
    %146 = vmatprep.subr.mxu0 0.0
    %147 = vmatpush1.msra.mxu0 0.0
    %148 = vmatprep.subr.mxu0 0.0
    %149 = vmatpush1.msra.mxu0 0.0
    %150 = vmatprep.subr.mxu0 0.0
    %151 = vmatpush1.msra.mxu0 0.0
    %152 = vmatprep.subr.mxu0 0.0
    %153 = vmatpush1.msra.mxu0 0.0
    %154 = vmatprep.subr.mxu0 0.0
    %155 = vmatpush1.msra.mxu0 0.0
    %156 = vmatprep.subr.mxu0 0.0
    %157 = vmatpush1.msra.mxu0 0.0
    %158 = vmatprep.subr.mxu0 0.0
    %159 = vmatpush1.msra.mxu0 0.0
    %160 = vmatprep.mubr.f32.mxu0 0.0
    %161 = vmatmul.mubr.f32.gmra.mrb[0].mxu0 %v94
    %v162 = vpop.f32.mrb[0].mxu0
    %v163 = vadd.f32 %v90, %v162
    %v164 = vpop.f32.mrb[0].mxu0
    %165 = vdwg.mxu0
    %v166 = vmax.f32 %v163, 0.0
    %v167 = vld [vmem:[%s3] sm:$0xff]
    %v168 = vld [vmem:[%s3 + $0x8] sm:$0xff]
    %v169 = vld [vmem:[%s3 + $0x10] sm:$0xff]
    %v170 = vld [vmem:[%s3 + $0x18] sm:$0xff]
    %v171 = vld [vmem:[%s3 + $0x20] sm:$0xff]
    %v172 = vld [vmem:[%s3 + $0x28] sm:$0xff]
    %v173 = vld [vmem:[%s3 + $0x30] sm:$0xff]
    %v174 = vld [vmem:[%s3 + $0x38] sm:$0xff]
    %v175 = vld [vmem:[%s3 + $0x40] sm:$0xff]
    %v176 = vld [vmem:[%s3 + $0x48] sm:$0xff]
    %v177 = vld [vmem:[%s3 + $0x50] sm:$0xff]
    %v178 = vld [vmem:[%s3 + $0x58] sm:$0xff]
    %v179 = vld [vmem:[%s3 + $0x60] sm:$0xff]
    %v180 = vld [vmem:[%s3 + $0x68] sm:$0xff]
    %v181 = vld [vmem:[%s3 + $0x70] sm:$0xff]
    %v182 = vld [vmem:[%s3 + $0x78] sm:$0xff]
    %v183 = vld [vmem:[%s4] sm:$0x1]
    %v185 = vlaneseq
    %v186 = vshrl.u32 %v185, 7
    %v187 = vsub.s32 0, %v186
    %v188 = vrot.slane %v183, %v187
    %190 = vmatprep.subr.mxu0 0.0
    %191 = vmatpush1.msra.mxu0 %v167
    %192 = vmatprep.subr.mxu0 0.0
    %193 = vmatpush1.msra.mxu0 %v168
    %194 = vmatprep.subr.mxu0 0.0
    %195 = vmatpush1.msra.mxu0 %v169
    %196 = vmatprep.subr.mxu0 0.0
    %197 = vmatpush1.msra.mxu0 %v170
    %198 = vmatprep.subr.mxu0 0.0
    %199 = vmatpush1.msra.mxu0 %v171
    %200 = vmatprep.subr.mxu0 0.0
    %201 = vmatpush1.msra.mxu0 %v172
    %202 = vmatprep.subr.mxu0 0.0
    %203 = vmatpush1.msra.mxu0 %v173
    %204 = vmatprep.subr.mxu0 0.0
    %205 = vmatpush1.msra.mxu0 %v174
    %206 = vmatprep.subr.mxu0 0.0
    %207 = vmatpush1.msra.mxu0 %v175
    %208 = vmatprep.subr.mxu0 0.0
    %209 = vmatpush1.msra.mxu0 %v176
    %210 = vmatprep.subr.mxu0 0.0
    %211 = vmatpush1.msra.mxu0 %v177
    %212 = vmatprep.subr.mxu0 0.0
    %213 = vmatpush1.msra.mxu0 %v178
    %214 = vmatprep.subr.mxu0 0.0
    %215 = vmatpush1.msra.mxu0 %v179
    %216 = vmatprep.subr.mxu0 0.0
    %217 = vmatpush1.msra.mxu0 %v180
    %218 = vmatprep.subr.mxu0 0.0
    %219 = vmatpush1.msra.mxu0 %v181
    %220 = vmatprep.subr.mxu0 0.0
    %221 = vmatpush1.msra.mxu0 %v182
    %222 = vmatprep.subr.mxu0 0.0
    %223 = vmatpush1.msra.mxu0 0.0
    %224 = vmatprep.subr.mxu0 0.0
    %225 = vmatpush1.msra.mxu0 0.0
    %226 = vmatprep.subr.mxu0 0.0
    %227 = vmatpush1.msra.mxu0 0.0
    %228 = vmatprep.subr.mxu0 0.0
    %229 = vmatpush1.msra.mxu0 0.0
    %230 = vmatprep.subr.mxu0 0.0
    %231 = vmatpush1.msra.mxu0 0.0
    %232 = vmatprep.subr.mxu0 0.0
    %233 = vmatpush1.msra.mxu0 0.0
    %234 = vmatprep.subr.mxu0 0.0
    %235 = vmatpush1.msra.mxu0 0.0
    %236 = vmatprep.subr.mxu0 0.0
    %237 = vmatpush1.msra.mxu0 0.0
    %238 = vmatprep.subr.mxu0 0.0
    %239 = vmatpush1.msra.mxu0 0.0
    %240 = vmatprep.subr.mxu0 0.0
    %241 = vmatpush1.msra.mxu0 0.0
    %242 = vmatprep.subr.mxu0 0.0
    %243 = vmatpush1.msra.mxu0 0.0
    %244 = vmatprep.subr.mxu0 0.0
    %245 = vmatpush1.msra.mxu0 0.0
    %246 = vmatprep.subr.mxu0 0.0
    %247 = vmatpush1.msra.mxu0 0.0
    %248 = vmatprep.subr.mxu0 0.0
    %249 = vmatpush1.msra.mxu0 0.0
    %250 = vmatprep.subr.mxu0 0.0
    %251 = vmatpush1.msra.mxu0 0.0
    %252 = vmatprep.subr.mxu0 0.0
    %253 = vmatpush1.msra.mxu0 0.0
    %254 = vmatprep.mubr.f32.mxu0 0.0
    %255 = vmatmul.mubr.f32.gmra.mrb[0].mxu0 %v166
    %v256 = vpop.f32.mrb[0].mxu0
    %v257 = vadd.f32 %v188, %v256
    %v258 = vpop.f32.mrb[0].mxu0
    %259 = vdwg.mxu0
    %v260 = vmax.f32 %v257, 0.0
    %v261 = vld [vmem:[#allocation5] sm:$0xff]
    %v262 = vld [vmem:[#allocation5 + $0x8] sm:$0xff]
    %v263 = vld [vmem:[#allocation5 + $0x10] sm:$0xff]
    %v264 = vld [vmem:[#allocation5 + $0x18] sm:$0xff]
    %v265 = vld [vmem:[#allocation5 + $0x20] sm:$0xff]
    %v266 = vld [vmem:[#allocation5 + $0x28] sm:$0xff]
    %v267 = vld [vmem:[#allocation5 + $0x30] sm:$0xff]
    %v268 = vld [vmem:[#allocation5 + $0x38] sm:$0xff]
    %v269 = vld [vmem:[#allocation5 + $0x40] sm:$0xff]
    %v270 = vld [vmem:[#allocation5 + $0x48] sm:$0xff]
    %v271 = vld [vmem:[#allocation5 + $0x50] sm:$0xff]
    %v272 = vld [vmem:[#allocation5 + $0x58] sm:$0xff]
    %v273 = vld [vmem:[#allocation5 + $0x60] sm:$0xff]
    %v274 = vld [vmem:[#allocation5 + $0x68] sm:$0xff]
    %v275 = vld [vmem:[#allocation5 + $0x70] sm:$0xff]
    %v276 = vld [vmem:[#allocation5 + $0x78] sm:$0xff]
    %v277 = vld [vmem:[%s6] sm:$0x1]
    %v279 = vlaneseq
    %v280 = vshrl.u32 %v279, 7
    %v281 = vsub.s32 0, %v280
    %v282 = vrot.slane %v277, %v281
    %284 = vmatprep.subr.mxu0 0.0
    %285 = vmatpush1.msra.mxu0 %v261
    %286 = vmatprep.subr.mxu0 0.0
    %287 = vmatpush1.msra.mxu0 %v262
    %288 = vmatprep.subr.mxu0 0.0
    %289 = vmatpush1.msra.mxu0 %v263
    %290 = vmatprep.subr.mxu0 0.0
    %291 = vmatpush1.msra.mxu0 %v264
    %292 = vmatprep.subr.mxu0 0.0
    %293 = vmatpush1.msra.mxu0 %v265
    %294 = vmatprep.subr.mxu0 0.0
    %295 = vmatpush1.msra.mxu0 %v266
    %296 = vmatprep.subr.mxu0 0.0
    %297 = vmatpush1.msra.mxu0 %v267
    %298 = vmatprep.subr.mxu0 0.0
    %299 = vmatpush1.msra.mxu0 %v268
    %300 = vmatprep.subr.mxu0 0.0
    %301 = vmatpush1.msra.mxu0 %v269
    %302 = vmatprep.subr.mxu0 0.0
    %303 = vmatpush1.msra.mxu0 %v270
    %304 = vmatprep.subr.mxu0 0.0
    %305 = vmatpush1.msra.mxu0 %v271
    %306 = vmatprep.subr.mxu0 0.0
    %307 = vmatpush1.msra.mxu0 %v272
    %308 = vmatprep.subr.mxu0 0.0
    %309 = vmatpush1.msra.mxu0 %v273
    %310 = vmatprep.subr.mxu0 0.0
    %311 = vmatpush1.msra.mxu0 %v274
    %312 = vmatprep.subr.mxu0 0.0
    %313 = vmatpush1.msra.mxu0 %v275
    %314 = vmatprep.subr.mxu0 0.0
    %315 = vmatpush1.msra.mxu0 %v276
    %316 = vmatprep.subr.mxu0 0.0
    %317 = vmatpush1.msra.mxu0 0.0
    %318 = vmatprep.subr.mxu0 0.0
    %319 = vmatpush1.msra.mxu0 0.0
    %320 = vmatprep.subr.mxu0 0.0
    %321 = vmatpush1.msra.mxu0 0.0
    %322 = vmatprep.subr.mxu0 0.0
    %323 = vmatpush1.msra.mxu0 0.0
    %324 = vmatprep.subr.mxu0 0.0
    %325 = vmatpush1.msra.mxu0 0.0
    %326 = vmatprep.subr.mxu0 0.0
    %327 = vmatpush1.msra.mxu0 0.0
    %328 = vmatprep.subr.mxu0 0.0
    %329 = vmatpush1.msra.mxu0 0.0
    %330 = vmatprep.subr.mxu0 0.0
    %331 = vmatpush1.msra.mxu0 0.0
    %332 = vmatprep.subr.mxu0 0.0
    %333 = vmatpush1.msra.mxu0 0.0
    %334 = vmatprep.subr.mxu0 0.0
    %335 = vmatpush1.msra.mxu0 0.0
    %336 = vmatprep.subr.mxu0 0.0
    %337 = vmatpush1.msra.mxu0 0.0
    %338 = vmatprep.subr.mxu0 0.0
    %339 = vmatpush1.msra.mxu0 0.0
    %340 = vmatprep.subr.mxu0 0.0
    %341 = vmatpush1.msra.mxu0 0.0
    %342 = vmatprep.subr.mxu0 0.0
    %343 = vmatpush1.msra.mxu0 0.0
    %344 = vmatprep.subr.mxu0 0.0
    %345 = vmatpush1.msra.mxu0 0.0
    %346 = vmatprep.subr.mxu0 0.0
    %347 = vmatpush1.msra.mxu0 0.0
    %348 = vmatprep.mubr.f32.mxu0 0.0
    %349 = vmatmul.mubr.f32.gmra.mrb[0].mxu0 %v260
    %v350 = vpop.f32.mrb[0].mxu0
    %v351 = vadd.f32 %v282, %v350
    %v352 = vpop.f32.mrb[0].mxu0
    %353 = vdwg.mxu0
    %v354 = vmax.f32 %v351, 0.0
    %v355 = vld [vmem:[#allocation7] sm:$0xff]
    %v356 = vld [vmem:[#allocation7 + $0x8] sm:$0xff]
    %v357 = vld [vmem:[#allocation7 + $0x10] sm:$0xff]
    %v358 = vld [vmem:[#allocation7 + $0x18] sm:$0xff]
    %v359 = vld [vmem:[#allocation7 + $0x20] sm:$0xff]
    %v360 = vld [vmem:[#allocation7 + $0x28] sm:$0xff]
    %v361 = vld [vmem:[#allocation7 + $0x30] sm:$0xff]
    %v362 = vld [vmem:[#allocation7 + $0x38] sm:$0xff]
    %v363 = vld [vmem:[#allocation7 + $0x40] sm:$0xff]
    %v364 = vld [vmem:[#allocation7 + $0x48] sm:$0xff]
    %v365 = vld [vmem:[#allocation7 + $0x50] sm:$0xff]
    %v366 = vld [vmem:[#allocation7 + $0x58] sm:$0xff]
    %v367 = vld [vmem:[#allocation7 + $0x60] sm:$0xff]
    %v368 = vld [vmem:[#allocation7 + $0x68] sm:$0xff]
    %v369 = vld [vmem:[#allocation7 + $0x70] sm:$0xff]
    %v370 = vld [vmem:[#allocation7 + $0x78] sm:$0xff]
    %v371 = vld [vmem:[%s8] sm:$0x1]
    %v373 = vlaneseq
    %v374 = vshrl.u32 %v373, 7
    %v375 = vsub.s32 0, %v374
    %v376 = vrot.slane %v371, %v375
    %378 = vmatprep.subr.mxu0 0.0
    %379 = vmatpush1.msra.mxu0 %v355
    %380 = vmatprep.subr.mxu0 0.0
    %381 = vmatpush1.msra.mxu0 %v356
    %382 = vmatprep.subr.mxu0 0.0
    %383 = vmatpush1.msra.mxu0 %v357
    %384 = vmatprep.subr.mxu0 0.0
    %385 = vmatpush1.msra.mxu0 %v358
    %386 = vmatprep.subr.mxu0 0.0
    %387 = vmatpush1.msra.mxu0 %v359
    %388 = vmatprep.subr.mxu0 0.0
    %389 = vmatpush1.msra.mxu0 %v360
    %390 = vmatprep.subr.mxu0 0.0
    %391 = vmatpush1.msra.mxu0 %v361
    %392 = vmatprep.subr.mxu0 0.0
    %393 = vmatpush1.msra.mxu0 %v362
    %394 = vmatprep.subr.mxu0 0.0
    %395 = vmatpush1.msra.mxu0 %v363
    %396 = vmatprep.subr.mxu0 0.0
    %397 = vmatpush1.msra.mxu0 %v364
    %398 = vmatprep.subr.mxu0 0.0
    %399 = vmatpush1.msra.mxu0 %v365
    %400 = vmatprep.subr.mxu0 0.0
    %401 = vmatpush1.msra.mxu0 %v366
    %402 = vmatprep.subr.mxu0 0.0
    %403 = vmatpush1.msra.mxu0 %v367
    %404 = vmatprep.subr.mxu0 0.0
    %405 = vmatpush1.msra.mxu0 %v368
    %406 = vmatprep.subr.mxu0 0.0
    %407 = vmatpush1.msra.mxu0 %v369
    %408 = vmatprep.subr.mxu0 0.0
    %409 = vmatpush1.msra.mxu0 %v370
    %410 = vmatprep.subr.mxu0 0.0
    %411 = vmatpush1.msra.mxu0 0.0
    %412 = vmatprep.subr.mxu0 0.0
    %413 = vmatpush1.msra.mxu0 0.0
    %414 = vmatprep.subr.mxu0 0.0
    %415 = vmatpush1.msra.mxu0 0.0
    %416 = vmatprep.subr.mxu0 0.0
    %417 = vmatpush1.msra.mxu0 0.0
    %418 = vmatprep.subr.mxu0 0.0
    %419 = vmatpush1.msra.mxu0 0.0
    %420 = vmatprep.subr.mxu0 0.0
    %421 = vmatpush1.msra.mxu0 0.0
    %422 = vmatprep.subr.mxu0 0.0
    %423 = vmatpush1.msra.mxu0 0.0
    %424 = vmatprep.subr.mxu0 0.0
    %425 = vmatpush1.msra.mxu0 0.0
    %426 = vmatprep.subr.mxu0 0.0
    %427 = vmatpush1.msra.mxu0 0.0
    %428 = vmatprep.subr.mxu0 0.0
    %429 = vmatpush1.msra.mxu0 0.0
    %430 = vmatprep.subr.mxu0 0.0
    %431 = vmatpush1.msra.mxu0 0.0
    %432 = vmatprep.subr.mxu0 0.0
    %433 = vmatpush1.msra.mxu0 0.0
    %434 = vmatprep.subr.mxu0 0.0
    %435 = vmatpush1.msra.mxu0 0.0
    %436 = vmatprep.subr.mxu0 0.0
    %437 = vmatpush1.msra.mxu0 0.0
    %438 = vmatprep.subr.mxu0 0.0
    %439 = vmatpush1.msra.mxu0 0.0
    %440 = vmatprep.subr.mxu0 0.0
    %441 = vmatpush1.msra.mxu0 0.0
    %442 = vmatprep.mubr.f32.mxu0 0.0
    %443 = vmatmul.mubr.f32.gmra.mrb[0].mxu0 %v354
    %v444 = vpop.f32.mrb[0].mxu0
    %v445 = vadd.f32 %v376, %v444
    %v446 = vpop.f32.mrb[0].mxu0
    %447 = vdwg.mxu0
    %v448 = vmax.f32 %v445, 0.0
    %v449 = vld [vmem:[%s9] sm:$0xff]
    %v450 = vld [vmem:[%s9 + $0x8] sm:$0xff]
    %v451 = vld [vmem:[%s9 + $0x10] sm:$0xff]
    %v452 = vld [vmem:[%s9 + $0x18] sm:$0xff]
    %v453 = vld [vmem:[%s9 + $0x20] sm:$0xff]
    %v454 = vld [vmem:[%s9 + $0x28] sm:$0xff]
    %v455 = vld [vmem:[%s9 + $0x30] sm:$0xff]
    %v456 = vld [vmem:[%s9 + $0x38] sm:$0xff]
    %v457 = vld [vmem:[%s9 + $0x40] sm:$0xff]
    %v458 = vld [vmem:[%s9 + $0x48] sm:$0xff]
    %v459 = vld [vmem:[%s9 + $0x50] sm:$0xff]
    %v460 = vld [vmem:[%s9 + $0x58] sm:$0xff]
    %v461 = vld [vmem:[%s9 + $0x60] sm:$0xff]
    %v462 = vld [vmem:[%s9 + $0x68] sm:$0xff]
    %v463 = vld [vmem:[%s9 + $0x70] sm:$0xff]
    %v464 = vld [vmem:[%s9 + $0x78] sm:$0xff]
    %v465 = vld [vmem:[%s10] sm:$0x1]
    %v467 = vlaneseq
    %v468 = vshrl.u32 %v467, 7
    %v469 = vsub.s32 0, %v468
    %v470 = vrot.slane %v465, %v469
    %472 = vmatprep.subr.mxu0 0.0
    %473 = vmatpush1.msra.mxu0 %v449
    %474 = vmatprep.subr.mxu0 0.0
    %475 = vmatpush1.msra.mxu0 %v450
    %476 = vmatprep.subr.mxu0 0.0
    %477 = vmatpush1.msra.mxu0 %v451
    %478 = vmatprep.subr.mxu0 0.0
    %479 = vmatpush1.msra.mxu0 %v452
    %480 = vmatprep.subr.mxu0 0.0
    %481 = vmatpush1.msra.mxu0 %v453
    %482 = vmatprep.subr.mxu0 0.0
    %483 = vmatpush1.msra.mxu0 %v454
    %484 = vmatprep.subr.mxu0 0.0
    %485 = vmatpush1.msra.mxu0 %v455
    %486 = vmatprep.subr.mxu0 0.0
    %487 = vmatpush1.msra.mxu0 %v456
    %488 = vmatprep.subr.mxu0 0.0
    %489 = vmatpush1.msra.mxu0 %v457
    %490 = vmatprep.subr.mxu0 0.0
    %491 = vmatpush1.msra.mxu0 %v458
    %492 = vmatprep.subr.mxu0 0.0
    %493 = vmatpush1.msra.mxu0 %v459
    %494 = vmatprep.subr.mxu0 0.0
    %495 = vmatpush1.msra.mxu0 %v460
    %496 = vmatprep.subr.mxu0 0.0
    %497 = vmatpush1.msra.mxu0 %v461
    %498 = vmatprep.subr.mxu0 0.0
    %499 = vmatpush1.msra.mxu0 %v462
    %500 = vmatprep.subr.mxu0 0.0
    %501 = vmatpush1.msra.mxu0 %v463
    %502 = vmatprep.subr.mxu0 0.0
    %503 = vmatpush1.msra.mxu0 %v464
    %504 = vmatprep.subr.mxu0 0.0
    %505 = vmatpush1.msra.mxu0 0.0
    %506 = vmatprep.subr.mxu0 0.0
    %507 = vmatpush1.msra.mxu0 0.0
    %508 = vmatprep.subr.mxu0 0.0
    %509 = vmatpush1.msra.mxu0 0.0
    %510 = vmatprep.subr.mxu0 0.0
    %511 = vmatpush1.msra.mxu0 0.0
    %512 = vmatprep.subr.mxu0 0.0
    %513 = vmatpush1.msra.mxu0 0.0
    %514 = vmatprep.subr.mxu0 0.0
    %515 = vmatpush1.msra.mxu0 0.0
    %516 = vmatprep.subr.mxu0 0.0
    %517 = vmatpush1.msra.mxu0 0.0
    %518 = vmatprep.subr.mxu0 0.0
    %519 = vmatpush1.msra.mxu0 0.0
    %520 = vmatprep.subr.mxu0 0.0
    %521 = vmatpush1.msra.mxu0 0.0
    %522 = vmatprep.subr.mxu0 0.0
    %523 = vmatpush1.msra.mxu0 0.0
    %524 = vmatprep.subr.mxu0 0.0
    %525 = vmatpush1.msra.mxu0 0.0
    %526 = vmatprep.subr.mxu0 0.0
    %527 = vmatpush1.msra.mxu0 0.0
    %528 = vmatprep.subr.mxu0 0.0
    %529 = vmatpush1.msra.mxu0 0.0
    %530 = vmatprep.subr.mxu0 0.0
    %531 = vmatpush1.msra.mxu0 0.0
    %532 = vmatprep.subr.mxu0 0.0
    %533 = vmatpush1.msra.mxu0 0.0
    %534 = vmatprep.subr.mxu0 0.0
    %535 = vmatpush1.msra.mxu0 0.0
    %536 = vmatprep.mubr.f32.mxu0 0.0
    %537 = vmatmul.mubr.f32.gmra.mrb[0].mxu0 %v448
    %v538 = vpop.f32.mrb[0].mxu0
    %v539 = vadd.f32 %v470, %v538
    %v540 = vpop.f32.mrb[0].mxu0
    %541 = vdwg.mxu0
    %vm542 = vcmask 130048
    %543 = vst.msk [vmem:[#allocation8] sm:$0xff] %vm542, %v539
    // Predicated region
    $region58: #{tpu_custom_call.1} parent=1 // pred_check
      _
    $region59: #{tpu_custom_call.1} parent=1 // pred_check_branch
      %545 = sbr.rel (0) target = $region61
    $region60: #{tpu_custom_call.1} parent=1 // pred_region
      %s547 = ssub.s32 128, 128
      %548 = vsyncadd [#allocation4], %s547
      %s550 = sshll.u32 [#allocation8], 4
      %s551 = int_to_ptr.vmem [resolvable:$true] %s550
      %553 = dma.vmem_to_hbm [thread:$0]  %s551, 128, %s11, [#allocation4]
    $region61: #{tpu_custom_call.1} parent=1 // pred_fallthru
      _
    // Predicated region
    $region62: #{tpu_custom_call.1} parent=1 // pred_check
      _
    $region63: #{tpu_custom_call.1} parent=1 // pred_check_branch
      %555 = sbr.rel (0) target = $region65
    $region64: #{tpu_custom_call.1} parent=1 // pred_region
      %556 = dma.done [#allocation4], 128
    $region65: #{tpu_custom_call.1} parent=1 // pred_fallthru
      _
    %557 = vsyncpa [#allocation3], 1
    %558 = vsyncpa [#allocation6], 1
    %559 = vsyncpa [#allocation4], 1

// kernel: tpu_custom_call.1
$region0: #{tpu_custom_call.1}
  #allocation0 [shape = 'u32[]', space=smem, size = 0x4, offset = 0x4, fixed_abs, tag = 'smem constant byte address 0x4 - core index']
  #allocation1 [shape = 'u32[144,128]{1,0:T(1,128)}', space=vmem, size = 0x12000, scoped, tag = 'internal scratch']
  %s0 = inlined_call_operand.vmem [shape: f32[8,32], index: 0, kind: input, shape index: {}]
  %s1 = inlined_call_operand.hbm [shape: f32[32,128], index: 1, kind: input, shape index: {}]
  %s2 = inlined_call_operand.vmem [shape: f32[1,128], index: 2, kind: input, shape index: {}]
  %s3 = inlined_call_operand.vmem [shape: f32[128,128], index: 3, kind: input, shape index: {}]
  %s4 = inlined_call_operand.vmem [shape: f32[1,128], index: 4, kind: input, shape index: {}]
  %s5 = inlined_call_operand.hbm [shape: f32[128,128], index: 5, kind: input, shape index: {}]
  %s6 = inlined_call_operand.vmem [shape: f32[1,128], index: 6, kind: input, shape index: {}]
  %s7 = inlined_call_operand.hbm [shape: f32[128,128], index: 7, kind: input, shape index: {}]
  %s8 = inlined_call_operand.vmem [shape: f32[1,128], index: 8, kind: input, shape index: {}]
  %s9 = inlined_call_operand.vmem [shape: f32[128,16], index: 9, kind: input, shape index: {}]
  %s10 = inlined_call_operand.vmem [shape: f32[1,16], index: 10, kind: input, shape index: {}]
  %s11 = inlined_call_operand.hbm [shape: f32[8,16], index: 11, kind: output, shape index: {}]
  %s12 = sld [smem:[#allocation0]]
  $region66: #{tpu_custom_call.1} parent=0
    _
  %s14 = ssub.s32 1, %s12
  %s15 = scalar_select 0, %s14, %s12
  $region1: #{tpu_custom_call.1} parent=0
    #allocation2 [shape = 'u8[16384]{0}', space=vmem, size = 0x4000, scoped, tag = 'input window, operand 1, single buffered']
    #allocation3 [shape = 's32[1]{0}', space=sflag, size = 0x4, scoped, tag = 'scoped memory for tpu_custom_call.1']
    #allocation4 [shape = 's32[1]{0}', space=sflag, size = 0x4, scoped, tag = 'scoped memory for tpu_custom_call.1']
    #allocation5 [shape = 'u8[65536]{0}', space=vmem, size = 0x10000, scoped, tag = 'input window, operand 5, single buffered']
    #allocation6 [shape = 's32[1]{0}', space=sflag, size = 0x4, scoped, tag = 'scoped memory for tpu_custom_call.1']
    #allocation7 [shape = 'u8[65536]{0}', space=vmem, size = 0x10000, scoped, tag = 'input window, operand 7, single buffered']
    #allocation8 [shape = 'u8[4096]{0}', space=vmem, size = 0x1000, scoped, tag = 'output window, operand 0, single buffered']
    %16 = vsyncpa [#allocation3], 0
    %17 = vsyncpa [#allocation6], 0
    %18 = vsyncpa [#allocation4], 0
    // Predicated region
    $region2: #{tpu_custom_call.1} parent=1 // pred_check
      _
    $region3: #{tpu_custom_call.1} parent=1 // pred_check_branch
      %20 = sbr.rel (0) target = $region5
    $region4: #{tpu_custom_call.1} parent=1 // pred_region
      _
    $region5: #{tpu_custom_call.1} parent=1 // pred_fallthru
      _
    // Predicated region
    $region6: #{tpu_custom_call.1} parent=1 // pred_check
      _
    $region7: #{tpu_custom_call.1} parent=1 // pred_check_branch
      %22 = sbr.rel (0) target = $region9
    $region8: #{tpu_custom_call.1} parent=1 // pred_region
      %s24 = ssub.s32 512, 512
      %25 = vsyncadd [#allocation3], %s24
      %s26 = sshll.u32 [#allocation2], 4
      %s27 = int_to_ptr.vmem [resolvable:$true] %s26
      %32 = dma.hbm_to_vmem [thread:$0]  %s1, 512, %s27, [#allocation3], 128, 128, 8
    $region9: #{tpu_custom_call.1} parent=1 // pred_fallthru
      _
    // Predicated region
    $region10: #{tpu_custom_call.1} parent=1 // pred_check
      _
    $region11: #{tpu_custom_call.1} parent=1 // pred_check_branch
      %34 = sbr.rel (0) target = $region13
    $region12: #{tpu_custom_call.1} parent=1 // pred_region
      _
    $region13: #{tpu_custom_call.1} parent=1 // pred_fallthru
      _
    // Predicated region
    $region14: #{tpu_custom_call.1} parent=1 // pred_check
      _
    $region15: #{tpu_custom_call.1} parent=1 // pred_check_branch
      %36 = sbr.rel (0) target = $region17
    $region16: #{tpu_custom_call.1} parent=1 // pred_region
      _
    $region17: #{tpu_custom_call.1} parent=1 // pred_fallthru
      _
    // Predicated region
    $region18: #{tpu_custom_call.1} parent=1 // pred_check
      _
    $region19: #{tpu_custom_call.1} parent=1 // pred_check_branch
      %38 = sbr.rel (0) target = $region21
    $region20: #{tpu_custom_call.1} parent=1 // pred_region
      _
    $region21: #{tpu_custom_call.1} parent=1 // pred_fallthru
      _
    // Predicated region
    $region22: #{tpu_custom_call.1} parent=1 // pred_check
      _
    $region23: #{tpu_custom_call.1} parent=1 // pred_check_branch
      %40 = sbr.rel (0) target = $region25
    $region24: #{tpu_custom_call.1} parent=1 // pred_region
      %s42 = ssub.s32 2048, 2048
      %43 = vsyncadd [#allocation6], %s42
      %s44 = sshll.u32 [#allocation5], 4
      %s45 = int_to_ptr.vmem [resolvable:$true] %s44
      %50 = dma.hbm_to_vmem [thread:$0]  %s5, 2048, %s45, [#allocation6], 128, 128, 8
    $region25: #{tpu_custom_call.1} parent=1 // pred_fallthru
      _
    // Predicated region
    $region26: #{tpu_custom_call.1} parent=1 // pred_check
      _
    $region27: #{tpu_custom_call.1} parent=1 // pred_check_branch
      %52 = sbr.rel (0) target = $region29
    $region28: #{tpu_custom_call.1} parent=1 // pred_region
      _
    $region29: #{tpu_custom_call.1} parent=1 // pred_fallthru
      _
    // Predicated region
    $region30: #{tpu_custom_call.1} parent=1 // pred_check
      _
    $region31: #{tpu_custom_call.1} parent=1 // pred_check_branch
      %54 = sbr.rel (0) target = $region33
    $region32: #{tpu_custom_call.1} parent=1 // pred_region
      %s56 = ssub.s32 2048, 2048
      %57 = vsyncadd [#allocation6], %s56
      %s58 = sshll.u32 [#allocation7], 4
      %s59 = int_to_ptr.vmem [resolvable:$true] %s58
      %64 = dma.hbm_to_vmem [thread:$0]  %s7, 2048, %s59, [#allocation6], 128, 128, 8
    $region33: #{tpu_custom_call.1} parent=1 // pred_fallthru
      _
    // Predicated region
    $region34: #{tpu_custom_call.1} parent=1 // pred_check
      _
    $region35: #{tpu_custom_call.1} parent=1 // pred_check_branch
      %66 = sbr.rel (0) target = $region37
    $region36: #{tpu_custom_call.1} parent=1 // pred_region
      _
    $region37: #{tpu_custom_call.1} parent=1 // pred_fallthru
      _
    // Predicated region
    $region38: #{tpu_custom_call.1} parent=1 // pred_check
      _
    $region39: #{tpu_custom_call.1} parent=1 // pred_check_branch
      %68 = sbr.rel (0) target = $region41
    $region40: #{tpu_custom_call.1} parent=1 // pred_region
      _
    $region41: #{tpu_custom_call.1} parent=1 // pred_fallthru
      _
    // Predicated region
    $region42: #{tpu_custom_call.1} parent=1 // pred_check
      _
    $region43: #{tpu_custom_call.1} parent=1 // pred_check_branch
      %70 = sbr.rel (0) target = $region45
    $region44: #{tpu_custom_call.1} parent=1 // pred_region
      _
    $region45: #{tpu_custom_call.1} parent=1 // pred_fallthru
      _
    // Predicated region
    $region46: #{tpu_custom_call.1} parent=1 // pred_check
      _
    $region47: #{tpu_custom_call.1} parent=1 // pred_check_branch
      %72 = sbr.rel (0) target = $region49
    $region48: #{tpu_custom_call.1} parent=1 // pred_region
      %73 = dma.done [#allocation3], 512
    $region49: #{tpu_custom_call.1} parent=1 // pred_fallthru
      _
    // Predicated region
    $region50: #{tpu_custom_call.1} parent=1 // pred_check
      _
    $region51: #{tpu_custom_call.1} parent=1 // pred_check_branch
      %75 = sbr.rel (0) target = $region53
    $region52: #{tpu_custom_call.1} parent=1 // pred_region
      %76 = dma.done [#allocation6], 2048
    $region53: #{tpu_custom_call.1} parent=1 // pred_fallthru
      _
    // Predicated region
    $region54: #{tpu_custom_call.1} parent=1 // pred_check
      _
    $region55: #{tpu_custom_call.1} parent=1 // pred_check_branch
      %78 = sbr.rel (0) target = $region57
    $region56: #{tpu_custom_call.1} parent=1 // pred_region
      %79 = dma.done [#allocation6], 2048
    $region57: #{tpu_custom_call.1} parent=1 // pred_fallthru
      _
    %v80 = vld [vmem:[%s0] sm:$0xff]
    %v81 = vld [vmem:[#allocation2] sm:$0xff]
    %v82 = vld [vmem:[#allocation2 + $0x8] sm:$0xff]
    %v83 = vld [vmem:[#allocation2 + $0x10] sm:$0xff]
    %v84 = vld [vmem:[#allocation2 + $0x18] sm:$0xff]
    %v85 = vld [vmem:[%s2] sm:$0x1]
    %v87 = vlaneseq
    %v88 = vshrl.u32 %v87, 7
    %v89 = vsub.s32 0, %v88
    %v90 = vrot.slane %v85, %v89
    %vm92 = vcmask 261120
    %v94 = vsel %vm92, %v80, 0
    %96 = vmatprep.subr.mxu0 0.0
    %97 = vmatpush1.msra.mxu0 %v81
    %98 = vmatprep.subr.mxu0 0.0
    %99 = vmatpush1.msra.mxu0 %v82
    %100 = vmatprep.subr.mxu0 0.0
    %101 = vmatpush1.msra.mxu0 %v83
    %102 = vmatprep.subr.mxu0 0.0
    %103 = vmatpush1.msra.mxu0 %v84
    %104 = vmatprep.subr.mxu0 0.0
    %105 = vmatpush1.msra.mxu0 0.0
    %106 = vmatprep.subr.mxu0 0.0
    %107 = vmatpush1.msra.mxu0 0.0
    %108 = vmatprep.subr.mxu0 0.0
    %109 = vmatpush1.msra.mxu0 0.0
    %110 = vmatprep.subr.mxu0 0.0
    %111 = vmatpush1.msra.mxu0 0.0
    %112 = vmatprep.subr.mxu0 0.0
    %113 = vmatpush1.msra.mxu0 0.0
    %114 = vmatprep.subr.mxu0 0.0
    %115 = vmatpush1.msra.mxu0 0.0
    %116 = vmatprep.subr.mxu0 0.0
    %117 = vmatpush1.msra.mxu0 0.0
    %118 = vmatprep.subr.mxu0 0.0
    %119 = vmatpush1.msra.mxu0 0.0
    %120 = vmatprep.subr.mxu0 0.0
    %121 = vmatpush1.msra.mxu0 0.0
    %122 = vmatprep.subr.mxu0 0.0
    %123 = vmatpush1.msra.mxu0 0.0
    %124 = vmatprep.subr.mxu0 0.0
    %125 = vmatpush1.msra.mxu0 0.0
    %126 = vmatprep.subr.mxu0 0.0
    %127 = vmatpush1.msra.mxu0 0.0
    %128 = vmatprep.subr.mxu0 0.0
    %129 = vmatpush1.msra.mxu0 0.0
    %130 = vmatprep.subr.mxu0 0.0
    %131 = vmatpush1.msra.mxu0 0.0
    %132 = vmatprep.subr.mxu0 0.0
    %133 = vmatpush1.msra.mxu0 0.0
    %134 = vmatprep.subr.mxu0 0.0
    %135 = vmatpush1.msra.mxu0 0.0
    %136 = vmatprep.subr.mxu0 0.0
    %137 = vmatpush1.msra.mxu0 0.0
    %138 = vmatprep.subr.mxu0 0.0
    %139 = vmatpush1.msra.mxu0 0.0
    %140 = vmatprep.subr.mxu0 0.0
    %141 = vmatpush1.msra.mxu0 0.0
    %142 = vmatprep.subr.mxu0 0.0
    %143 = vmatpush1.msra.mxu0 0.0
    %144 = vmatprep.subr.mxu0 0.0
    %145 = vmatpush1.msra.mxu0 0.0
    %146 = vmatprep.subr.mxu0 0.0
    %147 = vmatpush1.msra.mxu0 0.0
    %148 = vmatprep.subr.mxu0 0.0
    %149 = vmatpush1.msra.mxu0 0.0
    %150 = vmatprep.subr.mxu0 0.0
    %151 = vmatpush1.msra.mxu0 0.0
    %152 = vmatprep.subr.mxu0 0.0
    %153 = vmatpush1.msra.mxu0 0.0
    %154 = vmatprep.subr.mxu0 0.0
    %155 = vmatpush1.msra.mxu0 0.0
    %156 = vmatprep.subr.mxu0 0.0
    %157 = vmatpush1.msra.mxu0 0.0
    %158 = vmatprep.subr.mxu0 0.0
    %159 = vmatpush1.msra.mxu0 0.0
    %160 = vmatprep.mubr.f32.mxu0 0.0
    %161 = vmatmul.mubr.f32.gmra.mrb[0].mxu0 %v94
    %v162 = vpop.f32.mrb[0].mxu0
    %v163 = vadd.f32 %v90, %v162
    %v164 = vpop.f32.mrb[0].mxu0
    %165 = vdwg.mxu0
    %v166 = vmax.f32 %v163, 0.0
    %v167 = vld [vmem:[%s3] sm:$0xff]
    %v168 = vld [vmem:[%s3 + $0x8] sm:$0xff]
    %v169 = vld [vmem:[%s3 + $0x10] sm:$0xff]
    %v170 = vld [vmem:[%s3 + $0x18] sm:$0xff]
    %v171 = vld [vmem:[%s3 + $0x20] sm:$0xff]
    %v172 = vld [vmem:[%s3 + $0x28] sm:$0xff]
    %v173 = vld [vmem:[%s3 + $0x30] sm:$0xff]
    %v174 = vld [vmem:[%s3 + $0x38] sm:$0xff]
    %v175 = vld [vmem:[%s3 + $0x40] sm:$0xff]
    %v176 = vld [vmem:[%s3 + $0x48] sm:$0xff]
    %v177 = vld [vmem:[%s3 + $0x50] sm:$0xff]
    %v178 = vld [vmem:[%s3 + $0x58] sm:$0xff]
    %v179 = vld [vmem:[%s3 + $0x60] sm:$0xff]
    %v180 = vld [vmem:[%s3 + $0x68] sm:$0xff]
    %v181 = vld [vmem:[%s3 + $0x70] sm:$0xff]
    %v182 = vld [vmem:[%s3 + $0x78] sm:$0xff]
    %v183 = vld [vmem:[%s4] sm:$0x1]
    %v185 = vlaneseq
    %v186 = vshrl.u32 %v185, 7
    %v187 = vsub.s32 0, %v186
    %v188 = vrot.slane %v183, %v187
    %190 = vmatprep.subr.mxu0 0.0
    %191 = vmatpush1.msra.mxu0 %v167
    %192 = vmatprep.subr.mxu0 0.0
    %193 = vmatpush1.msra.mxu0 %v168
    %194 = vmatprep.subr.mxu0 0.0
    %195 = vmatpush1.msra.mxu0 %v169
    %196 = vmatprep.subr.mxu0 0.0
    %197 = vmatpush1.msra.mxu0 %v170
    %198 = vmatprep.subr.mxu0 0.0
    %199 = vmatpush1.msra.mxu0 %v171
    %200 = vmatprep.subr.mxu0 0.0
    %201 = vmatpush1.msra.mxu0 %v172
    %202 = vmatprep.subr.mxu0 0.0
    %203 = vmatpush1.msra.mxu0 %v173
    %204 = vmatprep.subr.mxu0 0.0
    %205 = vmatpush1.msra.mxu0 %v174
    %206 = vmatprep.subr.mxu0 0.0
    %207 = vmatpush1.msra.mxu0 %v175
    %208 = vmatprep.subr.mxu0 0.0
    %209 = vmatpush1.msra.mxu0 %v176
    %210 = vmatprep.subr.mxu0 0.0
    %211 = vmatpush1.msra.mxu0 %v177
    %212 = vmatprep.subr.mxu0 0.0
    %213 = vmatpush1.msra.mxu0 %v178
    %214 = vmatprep.subr.mxu0 0.0
    %215 = vmatpush1.msra.mxu0 %v179
    %216 = vmatprep.subr.mxu0 0.0
    %217 = vmatpush1.msra.mxu0 %v180
    %218 = vmatprep.subr.mxu0 0.0
    %219 = vmatpush1.msra.mxu0 %v181
    %220 = vmatprep.subr.mxu0 0.0
    %221 = vmatpush1.msra.mxu0 %v182
    %222 = vmatprep.subr.mxu0 0.0
    %223 = vmatpush1.msra.mxu0 0.0
    %224 = vmatprep.subr.mxu0 0.0
    %225 = vmatpush1.msra.mxu0 0.0
    %226 = vmatprep.subr.mxu0 0.0
    %227 = vmatpush1.msra.mxu0 0.0
    %228 = vmatprep.subr.mxu0 0.0
    %229 = vmatpush1.msra.mxu0 0.0
    %230 = vmatprep.subr.mxu0 0.0
    %231 = vmatpush1.msra.mxu0 0.0
    %232 = vmatprep.subr.mxu0 0.0
    %233 = vmatpush1.msra.mxu0 0.0
    %234 = vmatprep.subr.mxu0 0.0
    %235 = vmatpush1.msra.mxu0 0.0
    %236 = vmatprep.subr.mxu0 0.0
    %237 = vmatpush1.msra.mxu0 0.0
    %238 = vmatprep.subr.mxu0 0.0
    %239 = vmatpush1.msra.mxu0 0.0
    %240 = vmatprep.subr.mxu0 0.0
    %241 = vmatpush1.msra.mxu0 0.0
    %242 = vmatprep.subr.mxu0 0.0
    %243 = vmatpush1.msra.mxu0 0.0
    %244 = vmatprep.subr.mxu0 0.0
    %245 = vmatpush1.msra.mxu0 0.0
    %246 = vmatprep.subr.mxu0 0.0
    %247 = vmatpush1.msra.mxu0 0.0
    %248 = vmatprep.subr.mxu0 0.0
    %249 = vmatpush1.msra.mxu0 0.0
    %250 = vmatprep.subr.mxu0 0.0
    %251 = vmatpush1.msra.mxu0 0.0
    %252 = vmatprep.subr.mxu0 0.0
    %253 = vmatpush1.msra.mxu0 0.0
    %254 = vmatprep.mubr.f32.mxu0 0.0
    %255 = vmatmul.mubr.f32.gmra.mrb[0].mxu0 %v166
    %v256 = vpop.f32.mrb[0].mxu0
    %v257 = vadd.f32 %v188, %v256
    %v258 = vpop.f32.mrb[0].mxu0
    %259 = vdwg.mxu0
    %v260 = vmax.f32 %v257, 0.0
    %v261 = vld [vmem:[#allocation5] sm:$0xff]
    %v262 = vld [vmem:[#allocation5 + $0x8] sm:$0xff]
    %v263 = vld [vmem:[#allocation5 + $0x10] sm:$0xff]
    %v264 = vld [vmem:[#allocation5 + $0x18] sm:$0xff]
    %v265 = vld [vmem:[#allocation5 + $0x20] sm:$0xff]
    %v266 = vld [vmem:[#allocation5 + $0x28] sm:$0xff]
    %v267 = vld [vmem:[#allocation5 + $0x30] sm:$0xff]
    %v268 = vld [vmem:[#allocation5 + $0x38] sm:$0xff]
    %v269 = vld [vmem:[#allocation5 + $0x40] sm:$0xff]
    %v270 = vld [vmem:[#allocation5 + $0x48] sm:$0xff]
    %v271 = vld [vmem:[#allocation5 + $0x50] sm:$0xff]
    %v272 = vld [vmem:[#allocation5 + $0x58] sm:$0xff]
    %v273 = vld [vmem:[#allocation5 + $0x60] sm:$0xff]
    %v274 = vld [vmem:[#allocation5 + $0x68] sm:$0xff]
    %v275 = vld [vmem:[#allocation5 + $0x70] sm:$0xff]
    %v276 = vld [vmem:[#allocation5 + $0x78] sm:$0xff]
    %v277 = vld [vmem:[%s6] sm:$0x1]
    %v279 = vlaneseq
    %v280 = vshrl.u32 %v279, 7
    %v281 = vsub.s32 0, %v280
    %v282 = vrot.slane %v277, %v281
    %284 = vmatprep.subr.mxu0 0.0
    %285 = vmatpush1.msra.mxu0 %v261
    %286 = vmatprep.subr.mxu0 0.0
    %287 = vmatpush1.msra.mxu0 %v262
    %288 = vmatprep.subr.mxu0 0.0
    %289 = vmatpush1.msra.mxu0 %v263
    %290 = vmatprep.subr.mxu0 0.0
    %291 = vmatpush1.msra.mxu0 %v264
    %292 = vmatprep.subr.mxu0 0.0
    %293 = vmatpush1.msra.mxu0 %v265
    %294 = vmatprep.subr.mxu0 0.0
    %295 = vmatpush1.msra.mxu0 %v266
    %296 = vmatprep.subr.mxu0 0.0
    %297 = vmatpush1.msra.mxu0 %v267
    %298 = vmatprep.subr.mxu0 0.0
    %299 = vmatpush1.msra.mxu0 %v268
    %300 = vmatprep.subr.mxu0 0.0
    %301 = vmatpush1.msra.mxu0 %v269
    %302 = vmatprep.subr.mxu0 0.0
    %303 = vmatpush1.msra.mxu0 %v270
    %304 = vmatprep.subr.mxu0 0.0
    %305 = vmatpush1.msra.mxu0 %v271
    %306 = vmatprep.subr.mxu0 0.0
    %307 = vmatpush1.msra.mxu0 %v272
    %308 = vmatprep.subr.mxu0 0.0
    %309 = vmatpush1.msra.mxu0 %v273
    %310 = vmatprep.subr.mxu0 0.0
    %311 = vmatpush1.msra.mxu0 %v274
    %312 = vmatprep.subr.mxu0 0.0
    %313 = vmatpush1.msra.mxu0 %v275
    %314 = vmatprep.subr.mxu0 0.0
    %315 = vmatpush1.msra.mxu0 %v276
    %316 = vmatprep.subr.mxu0 0.0
    %317 = vmatpush1.msra.mxu0 0.0
    %318 = vmatprep.subr.mxu0 0.0
    %319 = vmatpush1.msra.mxu0 0.0
    %320 = vmatprep.subr.mxu0 0.0
    %321 = vmatpush1.msra.mxu0 0.0
    %322 = vmatprep.subr.mxu0 0.0
    %323 = vmatpush1.msra.mxu0 0.0
    %324 = vmatprep.subr.mxu0 0.0
    %325 = vmatpush1.msra.mxu0 0.0
    %326 = vmatprep.subr.mxu0 0.0
    %327 = vmatpush1.msra.mxu0 0.0
    %328 = vmatprep.subr.mxu0 0.0
    %329 = vmatpush1.msra.mxu0 0.0
    %330 = vmatprep.subr.mxu0 0.0
    %331 = vmatpush1.msra.mxu0 0.0
    %332 = vmatprep.subr.mxu0 0.0
    %333 = vmatpush1.msra.mxu0 0.0
    %334 = vmatprep.subr.mxu0 0.0
    %335 = vmatpush1.msra.mxu0 0.0
    %336 = vmatprep.subr.mxu0 0.0
    %337 = vmatpush1.msra.mxu0 0.0
    %338 = vmatprep.subr.mxu0 0.0
    %339 = vmatpush1.msra.mxu0 0.0
    %340 = vmatprep.subr.mxu0 0.0
    %341 = vmatpush1.msra.mxu0 0.0
    %342 = vmatprep.subr.mxu0 0.0
    %343 = vmatpush1.msra.mxu0 0.0
    %344 = vmatprep.subr.mxu0 0.0
    %345 = vmatpush1.msra.mxu0 0.0
    %346 = vmatprep.subr.mxu0 0.0
    %347 = vmatpush1.msra.mxu0 0.0
    %348 = vmatprep.mubr.f32.mxu0 0.0
    %349 = vmatmul.mubr.f32.gmra.mrb[0].mxu0 %v260
    %v350 = vpop.f32.mrb[0].mxu0
    %v351 = vadd.f32 %v282, %v350
    %v352 = vpop.f32.mrb[0].mxu0
    %353 = vdwg.mxu0
    %v354 = vmax.f32 %v351, 0.0
    %v355 = vld [vmem:[#allocation7] sm:$0xff]
    %v356 = vld [vmem:[#allocation7 + $0x8] sm:$0xff]
    %v357 = vld [vmem:[#allocation7 + $0x10] sm:$0xff]
    %v358 = vld [vmem:[#allocation7 + $0x18] sm:$0xff]
    %v359 = vld [vmem:[#allocation7 + $0x20] sm:$0xff]
    %v360 = vld [vmem:[#allocation7 + $0x28] sm:$0xff]
    %v361 = vld [vmem:[#allocation7 + $0x30] sm:$0xff]
    %v362 = vld [vmem:[#allocation7 + $0x38] sm:$0xff]
    %v363 = vld [vmem:[#allocation7 + $0x40] sm:$0xff]
    %v364 = vld [vmem:[#allocation7 + $0x48] sm:$0xff]
    %v365 = vld [vmem:[#allocation7 + $0x50] sm:$0xff]
    %v366 = vld [vmem:[#allocation7 + $0x58] sm:$0xff]
    %v367 = vld [vmem:[#allocation7 + $0x60] sm:$0xff]
    %v368 = vld [vmem:[#allocation7 + $0x68] sm:$0xff]
    %v369 = vld [vmem:[#allocation7 + $0x70] sm:$0xff]
    %v370 = vld [vmem:[#allocation7 + $0x78] sm:$0xff]
    %v371 = vld [vmem:[%s8] sm:$0x1]
    %v373 = vlaneseq
    %v374 = vshrl.u32 %v373, 7
    %v375 = vsub.s32 0, %v374
    %v376 = vrot.slane %v371, %v375
    %378 = vmatprep.subr.mxu0 0.0
    %379 = vmatpush1.msra.mxu0 %v355
    %380 = vmatprep.subr.mxu0 0.0
    %381 = vmatpush1.msra.mxu0 %v356
    %382 = vmatprep.subr.mxu0 0.0
    %383 = vmatpush1.msra.mxu0 %v357
    %384 = vmatprep.subr.mxu0 0.0
    %385 = vmatpush1.msra.mxu0 %v358
    %386 = vmatprep.subr.mxu0 0.0
    %387 = vmatpush1.msra.mxu0 %v359
    %388 = vmatprep.subr.mxu0 0.0
    %389 = vmatpush1.msra.mxu0 %v360
    %390 = vmatprep.subr.mxu0 0.0
    %391 = vmatpush1.msra.mxu0 %v361
    %392 = vmatprep.subr.mxu0 0.0
    %393 = vmatpush1.msra.mxu0 %v362
    %394 = vmatprep.subr.mxu0 0.0
    %395 = vmatpush1.msra.mxu0 %v363
    %396 = vmatprep.subr.mxu0 0.0
    %397 = vmatpush1.msra.mxu0 %v364
    %398 = vmatprep.subr.mxu0 0.0
    %399 = vmatpush1.msra.mxu0 %v365
    %400 = vmatprep.subr.mxu0 0.0
    %401 = vmatpush1.msra.mxu0 %v366
    %402 = vmatprep.subr.mxu0 0.0
    %403 = vmatpush1.msra.mxu0 %v367
    %404 = vmatprep.subr.mxu0 0.0
    %405 = vmatpush1.msra.mxu0 %v368
    %406 = vmatprep.subr.mxu0 0.0
    %407 = vmatpush1.msra.mxu0 %v369
    %408 = vmatprep.subr.mxu0 0.0
    %409 = vmatpush1.msra.mxu0 %v370
    %410 = vmatprep.subr.mxu0 0.0
    %411 = vmatpush1.msra.mxu0 0.0
    %412 = vmatprep.subr.mxu0 0.0
    %413 = vmatpush1.msra.mxu0 0.0
    %414 = vmatprep.subr.mxu0 0.0
    %415 = vmatpush1.msra.mxu0 0.0
    %416 = vmatprep.subr.mxu0 0.0
    %417 = vmatpush1.msra.mxu0 0.0
    %418 = vmatprep.subr.mxu0 0.0
    %419 = vmatpush1.msra.mxu0 0.0
    %420 = vmatprep.subr.mxu0 0.0
    %421 = vmatpush1.msra.mxu0 0.0
    %422 = vmatprep.subr.mxu0 0.0
    %423 = vmatpush1.msra.mxu0 0.0
    %424 = vmatprep.subr.mxu0 0.0
    %425 = vmatpush1.msra.mxu0 0.0
    %426 = vmatprep.subr.mxu0 0.0
    %427 = vmatpush1.msra.mxu0 0.0
    %428 = vmatprep.subr.mxu0 0.0
    %429 = vmatpush1.msra.mxu0 0.0
    %430 = vmatprep.subr.mxu0 0.0
    %431 = vmatpush1.msra.mxu0 0.0
    %432 = vmatprep.subr.mxu0 0.0
    %433 = vmatpush1.msra.mxu0 0.0
    %434 = vmatprep.subr.mxu0 0.0
    %435 = vmatpush1.msra.mxu0 0.0
    %436 = vmatprep.subr.mxu0 0.0
    %437 = vmatpush1.msra.mxu0 0.0
    %438 = vmatprep.subr.mxu0 0.0
    %439 = vmatpush1.msra.mxu0 0.0
    %440 = vmatprep.subr.mxu0 0.0
    %441 = vmatpush1.msra.mxu0 0.0
    %442 = vmatprep.mubr.f32.mxu0 0.0
    %443 = vmatmul.mubr.f32.gmra.mrb[0].mxu0 %v354
    %v444 = vpop.f32.mrb[0].mxu0
    %v445 = vadd.f32 %v376, %v444
    %v446 = vpop.f32.mrb[0].mxu0
    %447 = vdwg.mxu0
    %v448 = vmax.f32 %v445, 0.0
    %v449 = vld [vmem:[%s9] sm:$0xff]
    %v450 = vld [vmem:[%s9 + $0x8] sm:$0xff]
    %v451 = vld [vmem:[%s9 + $0x10] sm:$0xff]
    %v452 = vld [vmem:[%s9 + $0x18] sm:$0xff]
    %v453 = vld [vmem:[%s9 + $0x20] sm:$0xff]
    %v454 = vld [vmem:[%s9 + $0x28] sm:$0xff]
    %v455 = vld [vmem:[%s9 + $0x30] sm:$0xff]
    %v456 = vld [vmem:[%s9 + $0x38] sm:$0xff]
    %v457 = vld [vmem:[%s9 + $0x40] sm:$0xff]
    %v458 = vld [vmem:[%s9 + $0x48] sm:$0xff]
    %v459 = vld [vmem:[%s9 + $0x50] sm:$0xff]
    %v460 = vld [vmem:[%s9 + $0x58] sm:$0xff]
    %v461 = vld [vmem:[%s9 + $0x60] sm:$0xff]
    %v462 = vld [vmem:[%s9 + $0x68] sm:$0xff]
    %v463 = vld [vmem:[%s9 + $0x70] sm:$0xff]
    %v464 = vld [vmem:[%s9 + $0x78] sm:$0xff]
    %v465 = vld [vmem:[%s10] sm:$0x1]
    %v467 = vlaneseq
    %v468 = vshrl.u32 %v467, 7
    %v469 = vsub.s32 0, %v468
    %v470 = vrot.slane %v465, %v469
    %472 = vmatprep.subr.mxu0 0.0
    %473 = vmatpush1.msra.mxu0 %v449
    %474 = vmatprep.subr.mxu0 0.0
    %475 = vmatpush1.msra.mxu0 %v450
    %476 = vmatprep.subr.mxu0 0.0
    %477 = vmatpush1.msra.mxu0 %v451
    %478 = vmatprep.subr.mxu0 0.0
    %479 = vmatpush1.msra.mxu0 %v452
    %480 = vmatprep.subr.mxu0 0.0
    %481 = vmatpush1.msra.mxu0 %v453
    %482 = vmatprep.subr.mxu0 0.0
    %483 = vmatpush1.msra.mxu0 %v454
    %484 = vmatprep.subr.mxu0 0.0
    %485 = vmatpush1.msra.mxu0 %v455
    %486 = vmatprep.subr.mxu0 0.0
    %487 = vmatpush1.msra.mxu0 %v456
    %488 = vmatprep.subr.mxu0 0.0
    %489 = vmatpush1.msra.mxu0 %v457
    %490 = vmatprep.subr.mxu0 0.0
    %491 = vmatpush1.msra.mxu0 %v458
    %492 = vmatprep.subr.mxu0 0.0
    %493 = vmatpush1.msra.mxu0 %v459
    %494 = vmatprep.subr.mxu0 0.0
    %495 = vmatpush1.msra.mxu0 %v460
    %496 = vmatprep.subr.mxu0 0.0
    %497 = vmatpush1.msra.mxu0 %v461
    %498 = vmatprep.subr.mxu0 0.0
    %499 = vmatpush1.msra.mxu0 %v462
    %500 = vmatprep.subr.mxu0 0.0
    %501 = vmatpush1.msra.mxu0 %v463
    %502 = vmatprep.subr.mxu0 0.0
    %503 = vmatpush1.msra.mxu0 %v464
    %504 = vmatprep.subr.mxu0 0.0
    %505 = vmatpush1.msra.mxu0 0.0
    %506 = vmatprep.subr.mxu0 0.0
    %507 = vmatpush1.msra.mxu0 0.0
    %508 = vmatprep.subr.mxu0 0.0
    %509 = vmatpush1.msra.mxu0 0.0
    %510 = vmatprep.subr.mxu0 0.0
    %511 = vmatpush1.msra.mxu0 0.0
    %512 = vmatprep.subr.mxu0 0.0
    %513 = vmatpush1.msra.mxu0 0.0
    %514 = vmatprep.subr.mxu0 0.0
    %515 = vmatpush1.msra.mxu0 0.0
    %516 = vmatprep.subr.mxu0 0.0
    %517 = vmatpush1.msra.mxu0 0.0
    %518 = vmatprep.subr.mxu0 0.0
    %519 = vmatpush1.msra.mxu0 0.0
    %520 = vmatprep.subr.mxu0 0.0
    %521 = vmatpush1.msra.mxu0 0.0
    %522 = vmatprep.subr.mxu0 0.0
    %523 = vmatpush1.msra.mxu0 0.0
    %524 = vmatprep.subr.mxu0 0.0
    %525 = vmatpush1.msra.mxu0 0.0
    %526 = vmatprep.subr.mxu0 0.0
    %527 = vmatpush1.msra.mxu0 0.0
    %528 = vmatprep.subr.mxu0 0.0
    %529 = vmatpush1.msra.mxu0 0.0
    %530 = vmatprep.subr.mxu0 0.0
    %531 = vmatpush1.msra.mxu0 0.0
    %532 = vmatprep.subr.mxu0 0.0
    %533 = vmatpush1.msra.mxu0 0.0
    %534 = vmatprep.subr.mxu0 0.0
    %535 = vmatpush1.msra.mxu0 0.0
    %536 = vmatprep.mubr.f32.mxu0 0.0
    %537 = vmatmul.mubr.f32.gmra.mrb[0].mxu0 %v448
    %v538 = vpop.f32.mrb[0].mxu0
    %v539 = vadd.f32 %v470, %v538
    %v540 = vpop.f32.mrb[0].mxu0
    %541 = vdwg.mxu0
    %vm542 = vcmask 130048
    %543 = vst.msk [vmem:[#allocation8] sm:$0xff] %vm542, %v539
    // Predicated region
    $region58: #{tpu_custom_call.1} parent=1 // pred_check
      _
    $region59: #{tpu_custom_call.1} parent=1 // pred_check_branch
      %545 = sbr.rel (0) target = $region61
    $region60: #{tpu_custom_call.1} parent=1 // pred_region
      %s547 = ssub.s32 128, 128
      %548 = vsyncadd [#allocation4], %s547
      %s550 = sshll.u32 [#allocation8], 4
      %s551 = int_to_ptr.vmem [resolvable:$true] %s550
      %553 = dma.vmem_to_hbm [thread:$0]  %s551, 128, %s11, [#allocation4]
    $region61: #{tpu_custom_call.1} parent=1 // pred_fallthru
      _
    // Predicated region
    $region62: #{tpu_custom_call.1} parent=1 // pred_check
      _
    $region63: #{tpu_custom_call.1} parent=1 // pred_check_branch
      %555 = sbr.rel (0) target = $region65
    $region64: #{tpu_custom_call.1} parent=1 // pred_region
      %556 = dma.done [#allocation4], 128
    $region65: #{tpu_custom_call.1} parent=1 // pred_fallthru
      _
    %557 = vsyncpa [#allocation3], 1
    %558 = vsyncpa [#allocation6], 1
    %559 = vsyncpa [#allocation4], 1

</llo_original>
